<compile_context>
chip_gen: v7x
topology: tpu7x:2x2x1
jax: 0.10.0
libtpu: 0.0.40
codegen_flags: <defaults>
</compile_context>

<pallas_src>
import math
import functools

import jax
import jax.numpy as jnp
from jax import lax
from jax.experimental import pallas as pl
from jax.experimental.pallas import tpu as pltpu


_NEG_MASK = -1000000000000000.0   # same -1e15 multiplier as the PyTorch module


def _round_up(x, m):
    return (x + m - 1) // m * m


def _cross_attn_layer_kernel(
    q_ref, v_ref, m_ref,
    wq_ref, bq_ref, wk_ref, bk_ref, wv_ref, bv_ref,
    wo_ref, bo_ref, gamma_ref, beta_ref,
    o_ref,
    *, head_num: int, head_size: int, head_size_p: int,
    real_in_dim: int, eps: float,
):
    bt, lq, dp = q_ref.shape        # batch-tile, padded q_len, padded in_dim
    lv = v_ref.shape[1]             # padded v_len
    op = wq_ref.shape[1]            # padded (head-aligned) out_dim

    # Flatten (batch-tile, seq) into the MXU M dimension: one big matmul / proj.
    q2 = q_ref[...].reshape(bt * lq, dp)          # f32, kept for residual + LN
    q2b = q2.astype(jnp.bfloat16)
    v2b = v_ref[...].reshape(bt * lv, dp)         # already bf16

    # Q/K/V projections: bf16 MXU operands, f32 accumulate, f32 bias add.
    Q = jnp.dot(q2b, wq_ref[...], preferred_element_type=jnp.float32) + bq_ref[...]
    K = jnp.dot(v2b, wk_ref[...], preferred_element_type=jnp.float32) + bk_ref[...]
    V = jnp.dot(v2b, wv_ref[...], preferred_element_type=jnp.float32) + bv_ref[...]

    Q3 = Q.astype(jnp.bfloat16).reshape(bt, lq, op)
    K3 = K.astype(jnp.bfloat16).reshape(bt, lv, op)
    V3 = V.astype(jnp.bfloat16).reshape(bt, lv, op)

    inv_sqrt = 1.0 / math.sqrt(head_size)
    add_mask = m_ref[...] * _NEG_MASK             # (bt, 1, lv), broadcast in add

    head_outs = []
    for h in range(head_num):
        lo = h * head_size_p                      # 128-aligned -> free view slices
        hi = lo + head_size_p
        Qh = Q3[:, :, lo:hi]
        Kh = K3[:, :, lo:hi]
        Vh = V3[:, :, lo:hi]

        # Q @ K^T without materializing a transpose: contract last dims, batch 0.
        score = lax.dot_general(
            Qh, Kh, dimension_numbers=(((2,), (2,)), ((0,), (0,))),
            preferred_element_type=jnp.float32) * inv_sqrt
        score = score + add_mask                  # (bt, lq, lv)

        # numerically-stable softmax over the key axis (EUP reciprocal)
        m_max = jnp.max(score, axis=-1, keepdims=True)
        p = jnp.exp(score - m_max)
        denom = jnp.sum(p, axis=-1, keepdims=True)
        att = (p * pl.reciprocal(denom, approx=True)).astype(jnp.bfloat16)

        ctx_h = lax.dot_general(
            att, Vh, dimension_numbers=(((2,), (1,)), ((0,), (0,))),
            preferred_element_type=jnp.float32)   # (bt, lq, hs_p)
        head_outs.append(ctx_h)

    # heads are 128-lane aligned blocks, so this concat is layout-free
    ctx = head_outs[0] if head_num == 1 else jnp.concatenate(head_outs, axis=-1)
    ctx2 = ctx.astype(jnp.bfloat16).reshape(bt * lq, op)

    # Output projection (Attention_output.feedforward); dropout = identity (eval).
    ff = jnp.dot(ctx2, wo_ref[...], preferred_element_type=jnp.float32) + bo_ref[...]

    # Residual + LayerNorm over the REAL feature width.  Padded columns of both
    # ff and q2 are exactly zero; use centered (two-pass) variance with an exact
    # correction for the (dp - d) padded columns whose centered value is -mean.
    x = ff + q2
    inv_d = 1.0 / real_in_dim
    mean = jnp.sum(x, axis=-1, keepdims=True) * inv_d
    xc = x - mean
    pad_cols = dp - real_in_dim
    var = (jnp.sum(xc * xc, axis=-1, keepdims=True)
           - pad_cols * mean * mean) * inv_d
    y = xc * lax.rsqrt(var + eps) * gamma_ref[...] + beta_ref[...]

    o_ref[...] = y.reshape(bt, lq, dp).astype(o_ref.dtype)


def _vmem_bytes_estimate(bt, lq, lv, dp, op):
    """Rough per-grid-step VMEM footprint (pipeline buffers + intermediates)."""
    f32, bf16 = 4, 2
    # double-buffered activation tiles + output tile
    io = 2 * (bt * lq * dp * f32          # query tile (f32)
              + bt * lv * dp * bf16       # value tile (bf16)
              + bt * lv * f32             # mask tile
              + bt * lq * dp * f32)       # output tile
    # single-buffered weights / biases / LN params
    w = (3 * dp * op + op * dp) * bf16 + (3 * op + 3 * dp) * f32
    # in-kernel intermediates (Q/K/V f32 + bf16 copies, score/probs, ctx, LN)
    inter = (bt * lq * op * (f32 + bf16)
             + 2 * bt * lv * op * (f32 + bf16)
             + 2 * bt * lq * lv * f32
             + bt * lq * op * (f32 + bf16)
             + 3 * bt * lq * dp * f32)
    return io + w + int(1.25 * inter)


def cross_attention_layer(query_input, value_input, v_mask, params,
                          head_num: int = 1, eps: float = 1e-5):
    """Pallas-fused forward of Cross_attention_layer (eval mode)."""
    bs, q_len, in_dim = query_input.shape
    _, v_len, _ = value_input.shape
    out_dim = params["wq"].shape[1]
    assert out_dim % head_num == 0
    head_size = out_dim // head_num
    head_size_p = _round_up(head_size, 128)        # each head 128-lane aligned

    dp = _round_up(in_dim, 128)
    op = head_num * head_size_p
    lq = _round_up(q_len, 8)
    lv = _round_up(v_len, 128)

    # ---- VMEM-aware batch-tile selection, per-generation budget --------------
    try:
        vmem_cap = int(pltpu.get_tpu_info().vmem_capacity_bytes)
    except Exception:
        vmem_cap = 64 * 1024 * 1024                # conservative (v7x per-TC)
    budget = int(0.75 * vmem_cap)

    target_rows = 512                              # keep the 256x256 MXU pipe full
    bt = max(1, min(bs, max(1, target_rows // lq)))
    while bt > 1 and _vmem_bytes_estimate(bt, lq, lv, dp, op) > budget:
        bt -= 1
    # v7x megacore: make sure the (parallel) batch grid has at least 2 steps.
    if bs >= 2 and -(-bs // bt) < 2:
        bt = -(-bs // 2)
    n_steps = -(-bs // bt)                         # pad bs, no divisor search
    padded_bs = bt * n_steps
    grid = (n_steps,)

    vmem_limit = int(min(vmem_cap,
                         max(32 * 1024 * 1024,
                             2 * _vmem_bytes_estimate(bt, lq, lv, dp, op))))

    # ---- pad activations (bf16 value path, f32 query/mask) --------------------
    f32 = jnp.float32
    q_p = jnp.pad(query_input.astype(f32),
                  ((0, padded_bs - bs), (0, lq - q_len), (0, dp - in_dim)))
    v_p = jnp.pad(value_input.astype(f32),
                  ((0, padded_bs - bs), (0, lv - v_len), (0, dp - in_dim))
                  ).astype(jnp.bfloat16)
    # Padded key positions (and padded batch rows) masked out (1.0 -> -1e15).
    m_p = jnp.pad(v_mask.astype(f32),
                  ((0, padded_bs - bs), (0, lv - v_len)),
                  constant_values=1.0).reshape(padded_bs, 1, lv)

    # ---- pack weights: per-head 128-aligned columns/rows, bf16 ----------------
    def pack_qkv_w(w):     # (in_dim, out_dim) -> (dp, op)
        w = w.reshape(in_dim, head_num, head_size)
        w = jnp.pad(w, ((0, dp - in_dim), (0, 0), (0, head_size_p - head_size)))
        return w.reshape(dp, op).astype(jnp.bfloat16)

    def pack_qkv_b(b):     # (1, out_dim) -> (1, op)
        b = b.reshape(1, head_num, head_size)
        b = jnp.pad(b, ((0, 0), (0, 0), (0, head_size_p - head_size)))
        return b.reshape(1, op).astype(f32)

    def pack_o_w(w):       # (out_dim, in_dim) -> (op, dp)
        w = w.reshape(head_num, head_size, in_dim)
        w = jnp.pad(w, ((0, 0), (0, head_size_p - head_size), (0, dp - in_dim)))
        return w.reshape(op, dp).astype(jnp.bfloat16)

    def pad_row(b, c):     # (1, n) -> (1, c)
        return jnp.pad(b, ((0, 0), (0, c - b.shape[1]))).astype(f32)

    wq = pack_qkv_w(params["wq"]); bq = pack_qkv_b(params["bq"])
    wk = pack_qkv_w(params["wk"]); bk = pack_qkv_b(params["bk"])
    wv = pack_qkv_w(params["wv"]); bv = pack_qkv_b(params["bv"])
    wo = pack_o_w(params["wo"]);   bo = pad_row(params["bo"], dp)
    gamma = pad_row(params["gamma"], dp)   # padded gamma/beta = 0 -> padded cols 0
    beta = pad_row(params["beta"], dp)

    kernel = functools.partial(
        _cross_attn_layer_kernel,
        head_num=head_num, head_size=head_size, head_size_p=head_size_p,
        real_in_dim=in_dim, eps=eps)

    def wspec(shape):
        # constant across the grid -> single-buffer (halves weight VMEM)
        return pl.BlockSpec(shape, lambda b: (0, 0),
                            pipeline_mode=pl.Buffered(1))

    grid_spec = pltpu.PrefetchScalarGridSpec(
        num_scalar_prefetch=0,
        grid=grid,
        in_specs=[
            pl.BlockSpec((bt, lq, dp), lambda b: (b, 0, 0)),   # query (f32)
            pl.BlockSpec((bt, lv, dp), lambda b: (b, 0, 0)),   # value (bf16)
            pl.BlockSpec((bt, 1, lv), lambda b: (b, 0, 0)),    # mask
            wspec((dp, op)), wspec((1, op)),                   # Wq, bq
            wspec((dp, op)), wspec((1, op)),                   # Wk, bk
            wspec((dp, op)), wspec((1, op)),                   # Wv, bv
            wspec((op, dp)), wspec((1, dp)),                   # Wo, bo
            wspec((1, dp)), wspec((1, dp)),                    # gamma, beta
        ],
        out_specs=pl.BlockSpec((bt, lq, dp), lambda b: (b, 0, 0)),
    )

    # Advisory cost estimate (helps XLA schedule surrounding pad/slice ops).
    matmul_flops = (2 * padded_bs * lq * dp * op          # Q proj
                    + 2 * 2 * padded_bs * lv * dp * op    # K, V proj
                    + 2 * 2 * padded_bs * lq * lv * op    # score + context
                    + 2 * padded_bs * lq * op * dp)       # output proj
    cost = pl.CostEstimate(
        flops=matmul_flops,
        transcendentals=padded_bs * lq * (lv * head_num + 2),
        bytes_accessed=(padded_bs * lq * dp * 4 * 2
                        + padded_bs * lv * dp * 2
                        + padded_bs * lv * 4
                        + (3 * dp * op + op * dp) * 2
                        + (3 * op + 4 * dp) * 4),
    )

    out_p = pl.pallas_call(
        kernel,
        out_shape=jax.ShapeDtypeStruct((padded_bs, lq, dp), jnp.float32),
        grid_spec=grid_spec,
        compiler_params=pltpu.CompilerParams(
            dimension_semantics=("parallel",),
            vmem_limit_bytes=vmem_limit,
        ),
        cost_estimate=cost,
    )(
        q_p, v_p, m_p,
        wq, bq, wk, bk, wv, bv, wo, bo, gamma, beta,
    )

    return out_p[:bs, :q_len, :in_dim]


def init_params(key, in_dim, out_dim):
    """Deterministic synthetic parameters. Linear weights are stored as
    (in_features, out_features), i.e. already transposed relative to PyTorch."""
    ks = jax.random.split(key, 8)

    def lin(kw, kb, fan_in, fan_out):
        bound = 1.0 / math.sqrt(fan_in)
        w = jax.random.uniform(kw, (fan_in, fan_out), jnp.float32, -bound, bound)
        b = jax.random.uniform(kb, (1, fan_out), jnp.float32, -bound, bound)
        return w, b

    wq, bq = lin(ks[0], ks[1], in_dim, out_dim)
    wk, bk = lin(ks[2], ks[3], in_dim, out_dim)
    wv, bv = lin(ks[4], ks[5], in_dim, out_dim)
    wo, bo = lin(ks[6], ks[7], out_dim, in_dim)
    gamma = jnp.ones((1, in_dim), jnp.float32)
    beta = jnp.zeros((1, in_dim), jnp.float32)
    return dict(wq=wq, bq=bq, wk=wk, bk=bk, wv=wv, bv=bv,
                wo=wo, bo=bo, gamma=gamma, beta=beta)


def _reference(query_input, value_input, v_mask, params, head_num, eps=1e-5):
    """Pure-JAX reference mirroring the PyTorch forward (eval mode)."""
    bs, q_len, in_dim = query_input.shape
    out_dim = params["wq"].shape[1]
    hs = out_dim // head_num

    def proj(x, w, b):
        return jnp.einsum("bsd,de->bse", x, w) + b[0]

    Q = proj(query_input, params["wq"], params["bq"])
    K = proj(value_input, params["wk"], params["bk"])
    V = proj(value_input, params["wv"], params["bv"])

    def split(x):
        b, s, _ = x.shape
        return x.reshape(b, s, head_num, hs).transpose(0, 2, 1, 3)

    Qh, Kh, Vh = split(Q), split(K), split(V)
    score = jnp.einsum("bhqd,bhkd->bhqk", Qh, Kh) / math.sqrt(hs)
    score = score + v_mask[:, None, None, :] * (-1e15)
    att = jax.nn.softmax(score, axis=-1)
    out = jnp.einsum("bhqk,bhkd->bhqd", att, Vh)
    out = out.transpose(0, 2, 1, 3).reshape(bs, q_len, out_dim)

    ff = jnp.einsum("bsd,de->bse", out, params["wo"]) + params["bo"][0]
    x = ff + query_input
    mean = jnp.mean(x, axis=-1, keepdims=True)
    var = jnp.mean((x - mean) ** 2, axis=-1, keepdims=True)
    return (x - mean) / jnp.sqrt(var + eps) * params["gamma"][0] + params["beta"][0]


if __name__ == "__main__":
    key = jax.random.PRNGKey(0)

    def run_case(bs, q_len, v_len, in_dim, out_dim, head_num, subkey):
        kq, kv, km, kp = jax.random.split(subkey, 4)
        q = jax.random.normal(kq, (bs, q_len, in_dim), jnp.float32)
        v = jax.random.normal(kv, (bs, v_len, in_dim), jnp.float32)
        # mask: 0.0 = attend, 1.0 = masked out (multiplied by -1e15 like torch)
        v_mask = (jax.random.uniform(km, (bs, v_len)) > 0.75).astype(jnp.float32)
        params = init_params(kp, in_dim, out_dim)

        out = cross_attention_layer(q, v, v_mask, params, head_num=head_num)
        out = jax.block_until_ready(out)

        ref = _reference(q, v, v_mask, params, head_num)
        assert out.shape == (bs, q_len, in_dim)
        err = jnp.max(jnp.abs(out - ref))
        # bf16 MXU operands (f32 accumulate) + EUP approx reciprocal -> relaxed tol
        assert jnp.allclose(out, ref, atol=8e-2, rtol=8e-2), f"max err {err}"
        return err

    k1, k2 = jax.random.split(key)
    run_case(bs=2, q_len=8, v_len=16, in_dim=32, out_dim=32, head_num=1, subkey=k1)
    # exercises the padded-bs path (bs=3 -> bt=2, grid=2) and multi-head packing
    run_case(bs=3, q_len=8, v_len=16, in_dim=32, out_dim=64, head_num=2, subkey=k2)

    print("KERNEL_OK")
</pallas_src>

<mosaic_0001>
module attributes {stable_mosaic.version = 11 : i64} {
  func.func @_cross_attn_layer_kernel(%arg0: i32, %arg1: memref<1x8x128xf32, #tpu.memory_space<vmem>>, %arg2: memref<1x128x128xbf16, #tpu.memory_space<vmem>>, %arg3: memref<1x1x128xf32, #tpu.memory_space<vmem>>, %arg4: memref<128x128xbf16, #tpu.memory_space<vmem>>, %arg5: memref<1x128xf32, #tpu.memory_space<vmem>>, %arg6: memref<128x128xbf16, #tpu.memory_space<vmem>>, %arg7: memref<1x128xf32, #tpu.memory_space<vmem>>, %arg8: memref<128x128xbf16, #tpu.memory_space<vmem>>, %arg9: memref<1x128xf32, #tpu.memory_space<vmem>>, %arg10: memref<128x128xbf16, #tpu.memory_space<vmem>>, %arg11: memref<1x128xf32, #tpu.memory_space<vmem>>, %arg12: memref<1x128xf32, #tpu.memory_space<vmem>>, %arg13: memref<1x128xf32, #tpu.memory_space<vmem>>, %arg14: memref<1x8x128xf32, #tpu.memory_space<vmem>>) attributes {dimension_semantics = [#tpu.dimension_semantics<parallel>], iteration_bounds = array<i64: 2>, scalar_prefetch = 0 : i64, scratch_operands = 0 : i64, tpu.core_type = #tpu.core_type<tc>, window_params = [{transform_indices = @transform_0, window_bounds = array<i64: 1, 8, 128>}, {transform_indices = @transform_1, window_bounds = array<i64: 1, 128, 128>}, {transform_indices = @transform_2, window_bounds = array<i64: 1, 1, 128>}, {pipeline_mode = #tpu.pipeline_mode<synchronous>, transform_indices = @transform_3, window_bounds = array<i64: 128, 128>}, {pipeline_mode = #tpu.pipeline_mode<synchronous>, transform_indices = @transform_4, window_bounds = array<i64: 1, 128>}, {pipeline_mode = #tpu.pipeline_mode<synchronous>, transform_indices = @transform_5, window_bounds = array<i64: 128, 128>}, {pipeline_mode = #tpu.pipeline_mode<synchronous>, transform_indices = @transform_6, window_bounds = array<i64: 1, 128>}, {pipeline_mode = #tpu.pipeline_mode<synchronous>, transform_indices = @transform_7, window_bounds = array<i64: 128, 128>}, {pipeline_mode = #tpu.pipeline_mode<synchronous>, transform_indices = @transform_8, window_bounds = array<i64: 1, 128>}, {pipeline_mode = #tpu.pipeline_mode<synchronous>, transform_indices = @transform_9, window_bounds = array<i64: 128, 128>}, {pipeline_mode = #tpu.pipeline_mode<synchronous>, transform_indices = @transform_10, window_bounds = array<i64: 1, 128>}, {pipeline_mode = #tpu.pipeline_mode<synchronous>, transform_indices = @transform_11, window_bounds = array<i64: 1, 128>}, {pipeline_mode = #tpu.pipeline_mode<synchronous>, transform_indices = @transform_12, window_bounds = array<i64: 1, 128>}, {transform_indices = @transform_13, window_bounds = array<i64: 1, 8, 128>}]} {
    %c0 = arith.constant 0 : index
    %c0_0 = arith.constant 0 : index
    %c0_1 = arith.constant 0 : index
    %0 = vector.load %arg1[%c0, %c0_0, %c0_1] : memref<1x8x128xf32, #tpu.memory_space<vmem>>, vector<1x8x128xf32>
    %1 = vector.shape_cast %0 : vector<1x8x128xf32> to vector<8x128xf32>
    %2 = arith.truncf %1 : vector<8x128xf32> to vector<8x128xbf16>
    %c0_2 = arith.constant 0 : index
    %c0_3 = arith.constant 0 : index
    %c0_4 = arith.constant 0 : index
    %3 = vector.load %arg2[%c0_2, %c0_3, %c0_4] : memref<1x128x128xbf16, #tpu.memory_space<vmem>>, vector<1x128x128xbf16>
    %4 = vector.shape_cast %3 : vector<1x128x128xbf16> to vector<128x128xbf16>
    %c0_5 = arith.constant 0 : index
    %c0_6 = arith.constant 0 : index
    %5 = vector.load %arg4[%c0_5, %c0_6] : memref<128x128xbf16, #tpu.memory_space<vmem>>, vector<128x128xbf16>
    %cst = arith.constant dense<0.000000e+00> : vector<8x128xf32>
    %6 = tpu.matmul %2, %5, %cst {dimension_numbers = #tpu.dot_dimension_numbers<[1], [0], [0], [1], [0, 0, 1, 1], [], []>} : vector<8x128xbf16>, vector<128x128xbf16>, vector<8x128xf32> -> vector<8x128xf32>
    %c0_7 = arith.constant 0 : index
    %c0_8 = arith.constant 0 : index
    %7 = vector.load %arg5[%c0_7, %c0_8] : memref<1x128xf32, #tpu.memory_space<vmem>>, vector<1x128xf32>
    %8 = vector.broadcast %7 : vector<1x128xf32> to vector<8x128xf32>
    %9 = arith.addf %6, %8 : vector<8x128xf32>
    %c0_9 = arith.constant 0 : index
    %c0_10 = arith.constant 0 : index
    %10 = vector.load %arg6[%c0_9, %c0_10] : memref<128x128xbf16, #tpu.memory_space<vmem>>, vector<128x128xbf16>
    %cst_11 = arith.constant dense<0.000000e+00> : vector<128x128xf32>
    %11 = tpu.matmul %4, %10, %cst_11 {dimension_numbers = #tpu.dot_dimension_numbers<[1], [0], [0], [1], [0, 0, 1, 1], [], []>} : vector<128x128xbf16>, vector<128x128xbf16>, vector<128x128xf32> -> vector<128x128xf32>
    %c0_12 = arith.constant 0 : index
    %c0_13 = arith.constant 0 : index
    %12 = vector.load %arg7[%c0_12, %c0_13] : memref<1x128xf32, #tpu.memory_space<vmem>>, vector<1x128xf32>
    %13 = vector.broadcast %12 : vector<1x128xf32> to vector<128x128xf32>
    %14 = arith.addf %11, %13 : vector<128x128xf32>
    %c0_14 = arith.constant 0 : index
    %c0_15 = arith.constant 0 : index
    %15 = vector.load %arg8[%c0_14, %c0_15] : memref<128x128xbf16, #tpu.memory_space<vmem>>, vector<128x128xbf16>
    %cst_16 = arith.constant dense<0.000000e+00> : vector<128x128xf32>
    %16 = tpu.matmul %4, %15, %cst_16 {dimension_numbers = #tpu.dot_dimension_numbers<[1], [0], [0], [1], [0, 0, 1, 1], [], []>} : vector<128x128xbf16>, vector<128x128xbf16>, vector<128x128xf32> -> vector<128x128xf32>
    %c0_17 = arith.constant 0 : index
    %c0_18 = arith.constant 0 : index
    %17 = vector.load %arg9[%c0_17, %c0_18] : memref<1x128xf32, #tpu.memory_space<vmem>>, vector<1x128xf32>
    %18 = vector.broadcast %17 : vector<1x128xf32> to vector<128x128xf32>
    %19 = arith.addf %16, %18 : vector<128x128xf32>
    %20 = arith.truncf %9 : vector<8x128xf32> to vector<8x128xbf16>
    %21 = vector.shape_cast %20 : vector<8x128xbf16> to vector<1x8x128xbf16>
    %22 = arith.truncf %14 : vector<128x128xf32> to vector<128x128xbf16>
    %23 = vector.shape_cast %22 : vector<128x128xbf16> to vector<1x128x128xbf16>
    %24 = arith.truncf %19 : vector<128x128xf32> to vector<128x128xbf16>
    %25 = vector.shape_cast %24 : vector<128x128xbf16> to vector<1x128x128xbf16>
    %c0_19 = arith.constant 0 : index
    %c0_20 = arith.constant 0 : index
    %c0_21 = arith.constant 0 : index
    %26 = vector.load %arg3[%c0_19, %c0_20, %c0_21] : memref<1x1x128xf32, #tpu.memory_space<vmem>>, vector<1x1x128xf32>
    %cst_22 = arith.constant -9.99999986E+14 : f32
    %27 = vector.broadcast %cst_22 : f32 to vector<1x1x128xf32>
    %28 = arith.mulf %26, %27 : vector<1x1x128xf32>
    %cst_23 = arith.constant dense<0.000000e+00> : vector<1x8x128xf32>
    %29 = tpu.matmul %21, %23, %cst_23 {dimension_numbers = #tpu.dot_dimension_numbers<[2], [2], [1], [1], [0, 0, 0, 1, 1, 1], [0], [0]>} : vector<1x8x128xbf16>, vector<1x128x128xbf16>, vector<1x8x128xf32> -> vector<1x8x128xf32>
    %cst_24 = arith.constant 0.176776692 : f32
    %30 = vector.broadcast %cst_24 : f32 to vector<1x8x128xf32>
    %31 = arith.mulf %29, %30 : vector<1x8x128xf32>
    %32 = vector.broadcast %28 : vector<1x1x128xf32> to vector<1x8x128xf32>
    %33 = arith.addf %31, %32 : vector<1x8x128xf32>
    %cst_25 = arith.constant dense<0xFF800000> : vector<1x8xf32>
    %34 = vector.multi_reduction <maximumf>, %33, %cst_25 [2] : vector<1x8x128xf32> to vector<1x8xf32>
    %35 = vector.shape_cast %34 : vector<1x8xf32> to vector<1x8x1xf32>
    %36 = vector.broadcast %35 : vector<1x8x1xf32> to vector<1x8x128xf32>
    %37 = arith.subf %33, %36 : vector<1x8x128xf32>
    %38 = math.exp %37 : vector<1x8x128xf32>
    %cst_26 = arith.constant dense<0.000000e+00> : vector<1x8xf32>
    %39 = vector.multi_reduction <add>, %38, %cst_26 [2] : vector<1x8x128xf32> to vector<1x8xf32>
    %40 = vector.shape_cast %39 : vector<1x8xf32> to vector<1x8x1xf32>
    %41 = tpu.reciprocal %40 {approx = true} : vector<1x8x1xf32> -> vector<1x8x1xf32>
    %42 = vector.broadcast %41 : vector<1x8x1xf32> to vector<1x8x128xf32>
    %43 = arith.mulf %38, %42 : vector<1x8x128xf32>
    %44 = arith.truncf %43 : vector<1x8x128xf32> to vector<1x8x128xbf16>
    %cst_27 = arith.constant dense<0.000000e+00> : vector<1x8x128xf32>
    %45 = tpu.matmul %44, %25, %cst_27 {dimension_numbers = #tpu.dot_dimension_numbers<[2], [1], [1], [2], [0, 0, 0, 1, 1, 2], [0], [0]>} : vector<1x8x128xbf16>, vector<1x128x128xbf16>, vector<1x8x128xf32> -> vector<1x8x128xf32>
    %46 = arith.truncf %45 : vector<1x8x128xf32> to vector<1x8x128xbf16>
    %47 = vector.shape_cast %46 : vector<1x8x128xbf16> to vector<8x128xbf16>
    %c0_28 = arith.constant 0 : index
    %c0_29 = arith.constant 0 : index
    %48 = vector.load %arg10[%c0_28, %c0_29] : memref<128x128xbf16, #tpu.memory_space<vmem>>, vector<128x128xbf16>
    %cst_30 = arith.constant dense<0.000000e+00> : vector<8x128xf32>
    %49 = tpu.matmul %47, %48, %cst_30 {dimension_numbers = #tpu.dot_dimension_numbers<[1], [0], [0], [1], [0, 0, 1, 1], [], []>} : vector<8x128xbf16>, vector<128x128xbf16>, vector<8x128xf32> -> vector<8x128xf32>
    %c0_31 = arith.constant 0 : index
    %c0_32 = arith.constant 0 : index
    %50 = vector.load %arg11[%c0_31, %c0_32] : memref<1x128xf32, #tpu.memory_space<vmem>>, vector<1x128xf32>
    %51 = vector.broadcast %50 : vector<1x128xf32> to vector<8x128xf32>
    %52 = arith.addf %49, %51 : vector<8x128xf32>
    %53 = arith.addf %52, %1 : vector<8x128xf32>
    %cst_33 = arith.constant dense<0.000000e+00> : vector<8xf32>
    %54 = vector.multi_reduction <add>, %53, %cst_33 [1] : vector<8x128xf32> to vector<8xf32>
    %55 = vector.shape_cast %54 : vector<8xf32> to vector<8x1xf32>
    %cst_34 = arith.constant 3.125000e-02 : f32
    %56 = vector.broadcast %cst_34 : f32 to vector<8x1xf32>
    %57 = arith.mulf %55, %56 : vector<8x1xf32>
    %58 = vector.broadcast %57 : vector<8x1xf32> to vector<8x128xf32>
    %59 = arith.subf %53, %58 : vector<8x128xf32>
    %60 = arith.mulf %59, %59 : vector<8x128xf32>
    %cst_35 = arith.constant dense<0.000000e+00> : vector<8xf32>
    %61 = vector.multi_reduction <add>, %60, %cst_35 [1] : vector<8x128xf32> to vector<8xf32>
    %62 = vector.shape_cast %61 : vector<8xf32> to vector<8x1xf32>
    %cst_36 = arith.constant 9.600000e+01 : f32
    %63 = vector.broadcast %cst_36 : f32 to vector<8x1xf32>
    %64 = arith.mulf %63, %57 : vector<8x1xf32>
    %65 = arith.mulf %64, %57 : vector<8x1xf32>
    %66 = arith.subf %62, %65 : vector<8x1xf32>
    %cst_37 = arith.constant 3.125000e-02 : f32
    %67 = vector.broadcast %cst_37 : f32 to vector<8x1xf32>
    %68 = arith.mulf %66, %67 : vector<8x1xf32>
    %cst_38 = arith.constant 9.99999974E-6 : f32
    %69 = vector.broadcast %cst_38 : f32 to vector<8x1xf32>
    %70 = arith.addf %68, %69 : vector<8x1xf32>
    %71 = math.rsqrt %70 : vector<8x1xf32>
    %72 = vector.broadcast %71 : vector<8x1xf32> to vector<8x128xf32>
    %73 = arith.mulf %59, %72 : vector<8x128xf32>
    %c0_39 = arith.constant 0 : index
    %c0_40 = arith.constant 0 : index
    %74 = vector.load %arg12[%c0_39, %c0_40] : memref<1x128xf32, #tpu.memory_space<vmem>>, vector<1x128xf32>
    %75 = vector.broadcast %74 : vector<1x128xf32> to vector<8x128xf32>
    %76 = arith.mulf %73, %75 : vector<8x128xf32>
    %c0_41 = arith.constant 0 : index
    %c0_42 = arith.constant 0 : index
    %77 = vector.load %arg13[%c0_41, %c0_42] : memref<1x128xf32, #tpu.memory_space<vmem>>, vector<1x128xf32>
    %78 = vector.broadcast %77 : vector<1x128xf32> to vector<8x128xf32>
    %79 = arith.addf %76, %78 : vector<8x128xf32>
    %80 = vector.shape_cast %79 : vector<8x128xf32> to vector<1x8x128xf32>
    %c0_43 = arith.constant 0 : index
    %c0_44 = arith.constant 0 : index
    %c0_45 = arith.constant 0 : index
    %81 = vector.load %arg14[%c0_43, %c0_44, %c0_45] : memref<1x8x128xf32, #tpu.memory_space<vmem>>, vector<1x8x128xf32>
    tpu.vector_store %arg14[%c0_43, %c0_44, %c0_45], %80 {strides = array<i32>} : memref<1x8x128xf32, #tpu.memory_space<vmem>>, vector<1x8x128xf32>,
    return
  }
  func.func @transform_0(%arg0: i32) -> (i32, i32, i32) {
    %c0_i32 = arith.constant 0 : i32
    %c0_i32_0 = arith.constant 0 : i32
    %c0_i32_1 = arith.constant 0 : i32
    return %arg0, %c0_i32, %c0_i32_0 : i32, i32, i32
  }
  func.func @transform_1(%arg0: i32) -> (i32, i32, i32) {
    %c0_i32 = arith.constant 0 : i32
    %c0_i32_0 = arith.constant 0 : i32
    %c0_i32_1 = arith.constant 0 : i32
    return %arg0, %c0_i32, %c0_i32_0 : i32, i32, i32
  }
  func.func @transform_2(%arg0: i32) -> (i32, i32, i32) {
    %c0_i32 = arith.constant 0 : i32
    %c0_i32_0 = arith.constant 0 : i32
    %c0_i32_1 = arith.constant 0 : i32
    return %arg0, %c0_i32, %c0_i32_0 : i32, i32, i32
  }
  func.func @transform_3(%arg0: i32) -> (i32, i32) {
    %c0_i32 = arith.constant 0 : i32
    %c0_i32_0 = arith.constant 0 : i32
    %c0_i32_1 = arith.constant 0 : i32
    return %c0_i32, %c0_i32_0 : i32, i32
  }
  func.func @transform_4(%arg0: i32) -> (i32, i32) {
    %c0_i32 = arith.constant 0 : i32
    %c0_i32_0 = arith.constant 0 : i32
    %c0_i32_1 = arith.constant 0 : i32
    return %c0_i32, %c0_i32_0 : i32, i32
  }
  func.func @transform_5(%arg0: i32) -> (i32, i32) {
    %c0_i32 = arith.constant 0 : i32
    %c0_i32_0 = arith.constant 0 : i32
    %c0_i32_1 = arith.constant 0 : i32
    return %c0_i32, %c0_i32_0 : i32, i32
  }
  func.func @transform_6(%arg0: i32) -> (i32, i32) {
    %c0_i32 = arith.constant 0 : i32
    %c0_i32_0 = arith.constant 0 : i32
    %c0_i32_1 = arith.constant 0 : i32
    return %c0_i32, %c0_i32_0 : i32, i32
  }
  func.func @transform_7(%arg0: i32) -> (i32, i32) {
    %c0_i32 = arith.constant 0 : i32
    %c0_i32_0 = arith.constant 0 : i32
    %c0_i32_1 = arith.constant 0 : i32
    return %c0_i32, %c0_i32_0 : i32, i32
  }
  func.func @transform_8(%arg0: i32) -> (i32, i32) {
    %c0_i32 = arith.constant 0 : i32
    %c0_i32_0 = arith.constant 0 : i32
    %c0_i32_1 = arith.constant 0 : i32
    return %c0_i32, %c0_i32_0 : i32, i32
  }
  func.func @transform_9(%arg0: i32) -> (i32, i32) {
    %c0_i32 = arith.constant 0 : i32
    %c0_i32_0 = arith.constant 0 : i32
    %c0_i32_1 = arith.constant 0 : i32
    return %c0_i32, %c0_i32_0 : i32, i32
  }
  func.func @transform_10(%arg0: i32) -> (i32, i32) {
    %c0_i32 = arith.constant 0 : i32
    %c0_i32_0 = arith.constant 0 : i32
    %c0_i32_1 = arith.constant 0 : i32
    return %c0_i32, %c0_i32_0 : i32, i32
  }
  func.func @transform_11(%arg0: i32) -> (i32, i32) {
    %c0_i32 = arith.constant 0 : i32
    %c0_i32_0 = arith.constant 0 : i32
    %c0_i32_1 = arith.constant 0 : i32
    return %c0_i32, %c0_i32_0 : i32, i32
  }
  func.func @transform_12(%arg0: i32) -> (i32, i32) {
    %c0_i32 = arith.constant 0 : i32
    %c0_i32_0 = arith.constant 0 : i32
    %c0_i32_1 = arith.constant 0 : i32
    return %c0_i32, %c0_i32_0 : i32, i32
  }
  func.func @transform_13(%arg0: i32) -> (i32, i32, i32) {
    %c0_i32 = arith.constant 0 : i32
    %c0_i32_0 = arith.constant 0 : i32
    %c0_i32_1 = arith.constant 0 : i32
    return %arg0, %c0_i32, %c0_i32_0 : i32, i32, i32
  }
}

</mosaic_0001>

<llo_original>
// kernel: tpu_custom_call.1
$region0: #{tpu_custom_call.1}
  #allocation0 [shape = 'u32[]', space=smem, size = 0x4, offset = 0x4, fixed_abs, tag = 'smem constant byte address 0x4 - core index']
  #allocation1 [shape = 'u32[144,128]{1,0:T(1,128)}', space=vmem, size = 0x12000, scoped, tag = 'internal scratch']
  %s0 = inlined_call_operand.hbm [shape: f32[2,8,128], index: 0, kind: input, shape index: {}]
  %s1 = inlined_call_operand.hbm [shape: bf16[2,128,128], index: 1, kind: input, shape index: {}]
  %s2 = inlined_call_operand.vmem [shape: f32[2,1,128], index: 2, kind: input, shape index: {}]
  %s3 = inlined_call_operand.hbm [shape: bf16[128,128], index: 3, kind: input, shape index: {}]
  %s4 = inlined_call_operand.vmem [shape: f32[1,128], index: 4, kind: input, shape index: {}]
  %s5 = inlined_call_operand.hbm [shape: bf16[128,128], index: 5, kind: input, shape index: {}]
  %s6 = inlined_call_operand.vmem [shape: f32[1,128], index: 6, kind: input, shape index: {}]
  %s7 = inlined_call_operand.hbm [shape: bf16[128,128], index: 7, kind: input, shape index: {}]
  %s8 = inlined_call_operand.vmem [shape: f32[1,128], index: 8, kind: input, shape index: {}]
  %s9 = inlined_call_operand.hbm [shape: bf16[128,128], index: 9, kind: input, shape index: {}]
  %s10 = inlined_call_operand.vmem [shape: f32[1,128], index: 10, kind: input, shape index: {}]
  %s11 = inlined_call_operand.vmem [shape: f32[1,128], index: 11, kind: input, shape index: {}]
  %s12 = inlined_call_operand.vmem [shape: f32[1,128], index: 12, kind: input, shape index: {}]
  %s13 = inlined_call_operand.hbm [shape: f32[2,8,128], index: 13, kind: output, shape index: {}]
  %s14 = sld [smem:[#allocation0]]
  $region109: #{tpu_custom_call.1} parent=0
    _
  %s16 = ssub.s32 1, %s14
  %s17 = scalar_select 0, %s16, %s14
  $region1: #{tpu_custom_call.1} parent=0
    #allocation2 [shape = 'u8[8192]{0}', space=vmem, size = 0x2000, scoped, tag = 'input window, operand 0']
    #allocation3 [shape = 's32[2]{0}', space=sflag, size = 0x8, scoped, tag = 'scoped memory for tpu_custom_call.1']
    #allocation4 [shape = 's32[2]{0}', space=sflag, size = 0x8, scoped, tag = 'scoped memory for tpu_custom_call.1']
    #allocation5 [shape = 'u8[65536]{0}', space=vmem, size = 0x10000, scoped, tag = 'input window, operand 1']
    #allocation6 [shape = 's32[2]{0}', space=sflag, size = 0x8, scoped, tag = 'scoped memory for tpu_custom_call.1']
    #allocation7 [shape = 'u8[32768]{0}', space=vmem, size = 0x8000, scoped, tag = 'input window, operand 3, single buffered']
    #allocation8 [shape = 'u8[32768]{0}', space=vmem, size = 0x8000, scoped, tag = 'input window, operand 5, single buffered']
    #allocation9 [shape = 's32[1]{0}', space=sflag, size = 0x4, scoped, tag = 'scoped memory for tpu_custom_call.1']
    #allocation10 [shape = 'u8[32768]{0}', space=vmem, size = 0x8000, scoped, tag = 'input window, operand 7, single buffered']
    #allocation11 [shape = 'u8[32768]{0}', space=vmem, size = 0x8000, scoped, tag = 'input window, operand 9, single buffered']
    #allocation12 [shape = 's32[1]{0}', space=sflag, size = 0x4, scoped, tag = 'scoped memory for tpu_custom_call.1']
    #allocation13 [shape = 'u8[8192]{0}', space=vmem, size = 0x2000, scoped, tag = 'output window, operand 0']
    %18 = vsyncpa [#allocation3], 0
    %s19 = scalar_lea.sflag [#allocation3], 1
    %20 = vsyncpa %s19, 0
    %21 = vsyncpa [#allocation6], 0
    %s22 = scalar_lea.sflag [#allocation6], 1
    %23 = vsyncpa %s22, 0
    %24 = vsyncpa [#allocation9], 0
    %25 = vsyncpa [#allocation12], 0
    %26 = vsyncpa [#allocation4], 0
    %s27 = scalar_lea.sflag [#allocation4], 1
    %28 = vsyncpa %s27, 0
    loop: start=0, step=1, limit=4
    $region2: #{tpu_custom_call.1} parent=1 // loop_pre_header
      _
    $region3: #{tpu_custom_call.1} parent=1 // loop_header
      %s30 = sphi 0, %s34
      %p31 = scmp.ge.s32.totalorder %s30, 4
      %s40 = sphi 0, %s42
      %s43 = sphi 0, %s40
      %s44 = sphi 0, %s43
      %s60 = sphi 0, %s44
      %s66 = sphi 0, %s68
      %s69 = sphi 0, %s66
      %s70 = sphi 0, %s69
      %s86 = sphi 0, %s70
      %s92 = sphi 0, %s94
      %s95 = sphi 0, %s92
      %s96 = sphi 0, %s95
      %s112 = sphi 0, %s96
      %s116 = sphi 0, %s116
      %s118 = sphi 0, %s116
      %s119 = sphi 0, %s118
      %s133 = sphi 0, %s119
      %s137 = sphi 0, %s137
      %s139 = sphi 0, %s137
      %s140 = sphi 0, %s139
      %s154 = sphi 0, %s140
      %s158 = sphi 0, %s158
      %s160 = sphi 0, %s158
      %s161 = sphi 0, %s160
      %s175 = sphi 0, %s161
      %s179 = sphi 0, %s179
      %s181 = sphi 0, %s179
      %s182 = sphi 0, %s181
      %s196 = sphi 0, %s182
      %s200 = sphi 0, %s200
      %s202 = sphi 0, %s200
      %s203 = sphi 0, %s202
      %s217 = sphi 0, %s203
      %s221 = sphi 0, %s221
      %s223 = sphi 0, %s221
      %s224 = sphi 0, %s223
      %s238 = sphi 0, %s224
      %s242 = sphi 0, %s242
      %s244 = sphi 0, %s242
      %s245 = sphi 0, %s244
      %s259 = sphi 0, %s245
      %s263 = sphi 0, %s263
      %s265 = sphi 0, %s263
      %s266 = sphi 0, %s265
      %s280 = sphi 0, %s266
      %s284 = sphi 0, %s284
      %s286 = sphi 0, %s284
      %s287 = sphi 0, %s286
      %s301 = sphi 0, %s287
      %s305 = sphi 0, %s305
      %s307 = sphi 0, %s305
      %s308 = sphi 0, %s307
      %s322 = sphi 0, %s308
      %s328 = sphi 0, %s330
      %s331 = sphi 0, %s328
      %s332 = sphi 0, %s331
      %s348 = sphi 0, %s332
    $region4: #{tpu_custom_call.1} parent=1 // loop_header_branch
      %33 = sbr.rel (%p31) target = $region8
    $region5: #{tpu_custom_call.1} parent=1 // loop_body
      %s35 = ssub.s32 %s30, 1
      %s36 = ssub.s32 %s30, 2
      %s37 = sadd.s32 %s30, 1
      %s38 = ssub.s32 %s30, %s37
      %p39 = scmp.eq.s32.totalorder %s38, 0
      %s41 = sadd.s32 %s40, 1
      %s42 = scalar_select %p39, %s40, %s41
      %p45 = pneg %p39
      %p46 = scmp.eq.s32.totalorder %s30, 1
      %p47 = por %p45, %p46
      %p48 = scmp.ne.s32.totalorder %s40, %s43
      %p49 = scmp.eq.s32.totalorder %s30, 0
      %p50 = por %p48, %p49
      %p51 = scmp.ne.s32.totalorder %s40, %s43
      %p52 = scmp.eq.s32.totalorder %s35, 1
      %p53 = por %p51, %p52
      %p54 = scmp.ne.s32.totalorder %s43, %s44
      %p55 = scmp.eq.s32.totalorder %s35, 0
      %p56 = por %p54, %p55
      %p57 = scmp.ne.s32.totalorder %s43, %s44
      %p58 = scmp.eq.s32.totalorder %s36, 1
      %p59 = por %p57, %p58
      %p61 = scmp.ne.s32.totalorder %s44, %s60
      %p62 = scmp.eq.s32.totalorder %s36, 0
      %p63 = por %p61, %p62
      %s64 = ssub.s32 %s30, %s37
      %p65 = scmp.eq.s32.totalorder %s64, 0
      %s67 = sadd.s32 %s66, 1
      %s68 = scalar_select %p65, %s66, %s67
      %p71 = pneg %p65
      %p72 = scmp.eq.s32.totalorder %s30, 1
      %p73 = por %p71, %p72
      %p74 = scmp.ne.s32.totalorder %s66, %s69
      %p75 = scmp.eq.s32.totalorder %s30, 0
      %p76 = por %p74, %p75
      %p77 = scmp.ne.s32.totalorder %s66, %s69
      %p78 = scmp.eq.s32.totalorder %s35, 1
      %p79 = por %p77, %p78
      %p80 = scmp.ne.s32.totalorder %s69, %s70
      %p81 = scmp.eq.s32.totalorder %s35, 0
      %p82 = por %p80, %p81
      %p83 = scmp.ne.s32.totalorder %s69, %s70
      %p84 = scmp.eq.s32.totalorder %s36, 1
      %p85 = por %p83, %p84
      %p87 = scmp.ne.s32.totalorder %s70, %s86
      %p88 = scmp.eq.s32.totalorder %s36, 0
      %p89 = por %p87, %p88
      %s90 = ssub.s32 %s30, %s37
      %p91 = scmp.eq.s32.totalorder %s90, 0
      %s93 = sadd.s32 %s92, 1
      %s94 = scalar_select %p91, %s92, %s93
      %p97 = pneg %p91
      %p98 = scmp.eq.s32.totalorder %s30, 1
      %p99 = por %p97, %p98
      %p100 = scmp.ne.s32.totalorder %s92, %s95
      %p101 = scmp.eq.s32.totalorder %s30, 0
      %p102 = por %p100, %p101
      %p103 = scmp.ne.s32.totalorder %s92, %s95
      %p104 = scmp.eq.s32.totalorder %s35, 1
      %p105 = por %p103, %p104
      %p106 = scmp.ne.s32.totalorder %s95, %s96
      %p107 = scmp.eq.s32.totalorder %s35, 0
      %p108 = por %p106, %p107
      %p109 = scmp.ne.s32.totalorder %s95, %s96
      %p110 = scmp.eq.s32.totalorder %s36, 1
      %p111 = por %p109, %p110
      %p113 = scmp.ne.s32.totalorder %s96, %s112
      %p114 = scmp.eq.s32.totalorder %s36, 0
      %p115 = por %p113, %p114
      %s117 = sadd.s32 %s116, 1
      %p120 = scmp.eq.s32.totalorder %s30, 1
      %p121 = scmp.ne.s32.totalorder %s116, %s118
      %p122 = scmp.eq.s32.totalorder %s30, 0
      %p123 = por %p121, %p122
      %p124 = scmp.ne.s32.totalorder %s116, %s118
      %p125 = scmp.eq.s32.totalorder %s35, 1
      %p126 = por %p124, %p125
      %p127 = scmp.ne.s32.totalorder %s118, %s119
      %p128 = scmp.eq.s32.totalorder %s35, 0
      %p129 = por %p127, %p128
      %p130 = scmp.ne.s32.totalorder %s118, %s119
      %p131 = scmp.eq.s32.totalorder %s36, 1
      %p132 = por %p130, %p131
      %p134 = scmp.ne.s32.totalorder %s119, %s133
      %p135 = scmp.eq.s32.totalorder %s36, 0
      %p136 = por %p134, %p135
      %s138 = sadd.s32 %s137, 1
      %p141 = scmp.eq.s32.totalorder %s30, 1
      %p142 = scmp.ne.s32.totalorder %s137, %s139
      %p143 = scmp.eq.s32.totalorder %s30, 0
      %p144 = por %p142, %p143
      %p145 = scmp.ne.s32.totalorder %s137, %s139
      %p146 = scmp.eq.s32.totalorder %s35, 1
      %p147 = por %p145, %p146
      %p148 = scmp.ne.s32.totalorder %s139, %s140
      %p149 = scmp.eq.s32.totalorder %s35, 0
      %p150 = por %p148, %p149
      %p151 = scmp.ne.s32.totalorder %s139, %s140
      %p152 = scmp.eq.s32.totalorder %s36, 1
      %p153 = por %p151, %p152
      %p155 = scmp.ne.s32.totalorder %s140, %s154
      %p156 = scmp.eq.s32.totalorder %s36, 0
      %p157 = por %p155, %p156
      %s159 = sadd.s32 %s158, 1
      %p162 = scmp.eq.s32.totalorder %s30, 1
      %p163 = scmp.ne.s32.totalorder %s158, %s160
      %p164 = scmp.eq.s32.totalorder %s30, 0
      %p165 = por %p163, %p164
      %p166 = scmp.ne.s32.totalorder %s158, %s160
      %p167 = scmp.eq.s32.totalorder %s35, 1
      %p168 = por %p166, %p167
      %p169 = scmp.ne.s32.totalorder %s160, %s161
      %p170 = scmp.eq.s32.totalorder %s35, 0
      %p171 = por %p169, %p170
      %p172 = scmp.ne.s32.totalorder %s160, %s161
      %p173 = scmp.eq.s32.totalorder %s36, 1
      %p174 = por %p172, %p173
      %p176 = scmp.ne.s32.totalorder %s161, %s175
      %p177 = scmp.eq.s32.totalorder %s36, 0
      %p178 = por %p176, %p177
      %s180 = sadd.s32 %s179, 1
      %p183 = scmp.eq.s32.totalorder %s30, 1
      %p184 = scmp.ne.s32.totalorder %s179, %s181
      %p185 = scmp.eq.s32.totalorder %s30, 0
      %p186 = por %p184, %p185
      %p187 = scmp.ne.s32.totalorder %s179, %s181
      %p188 = scmp.eq.s32.totalorder %s35, 1
      %p189 = por %p187, %p188
      %p190 = scmp.ne.s32.totalorder %s181, %s182
      %p191 = scmp.eq.s32.totalorder %s35, 0
      %p192 = por %p190, %p191
      %p193 = scmp.ne.s32.totalorder %s181, %s182
      %p194 = scmp.eq.s32.totalorder %s36, 1
      %p195 = por %p193, %p194
      %p197 = scmp.ne.s32.totalorder %s182, %s196
      %p198 = scmp.eq.s32.totalorder %s36, 0
      %p199 = por %p197, %p198
      %s201 = sadd.s32 %s200, 1
      %p204 = scmp.eq.s32.totalorder %s30, 1
      %p205 = scmp.ne.s32.totalorder %s200, %s202
      %p206 = scmp.eq.s32.totalorder %s30, 0
      %p207 = por %p205, %p206
      %p208 = scmp.ne.s32.totalorder %s200, %s202
      %p209 = scmp.eq.s32.totalorder %s35, 1
      %p210 = por %p208, %p209
      %p211 = scmp.ne.s32.totalorder %s202, %s203
      %p212 = scmp.eq.s32.totalorder %s35, 0
      %p213 = por %p211, %p212
      %p214 = scmp.ne.s32.totalorder %s202, %s203
      %p215 = scmp.eq.s32.totalorder %s36, 1
      %p216 = por %p214, %p215
      %p218 = scmp.ne.s32.totalorder %s203, %s217
      %p219 = scmp.eq.s32.totalorder %s36, 0
      %p220 = por %p218, %p219
      %s222 = sadd.s32 %s221, 1
      %p225 = scmp.eq.s32.totalorder %s30, 1
      %p226 = scmp.ne.s32.totalorder %s221, %s223
      %p227 = scmp.eq.s32.totalorder %s30, 0
      %p228 = por %p226, %p227
      %p229 = scmp.ne.s32.totalorder %s221, %s223
      %p230 = scmp.eq.s32.totalorder %s35, 1
      %p231 = por %p229, %p230
      %p232 = scmp.ne.s32.totalorder %s223, %s224
      %p233 = scmp.eq.s32.totalorder %s35, 0
      %p234 = por %p232, %p233
      %p235 = scmp.ne.s32.totalorder %s223, %s224
      %p236 = scmp.eq.s32.totalorder %s36, 1
      %p237 = por %p235, %p236
      %p239 = scmp.ne.s32.totalorder %s224, %s238
      %p240 = scmp.eq.s32.totalorder %s36, 0
      %p241 = por %p239, %p240
      %s243 = sadd.s32 %s242, 1
      %p246 = scmp.eq.s32.totalorder %s30, 1
      %p247 = scmp.ne.s32.totalorder %s242, %s244
      %p248 = scmp.eq.s32.totalorder %s30, 0
      %p249 = por %p247, %p248
      %p250 = scmp.ne.s32.totalorder %s242, %s244
      %p251 = scmp.eq.s32.totalorder %s35, 1
      %p252 = por %p250, %p251
      %p253 = scmp.ne.s32.totalorder %s244, %s245
      %p254 = scmp.eq.s32.totalorder %s35, 0
      %p255 = por %p253, %p254
      %p256 = scmp.ne.s32.totalorder %s244, %s245
      %p257 = scmp.eq.s32.totalorder %s36, 1
      %p258 = por %p256, %p257
      %p260 = scmp.ne.s32.totalorder %s245, %s259
      %p261 = scmp.eq.s32.totalorder %s36, 0
      %p262 = por %p260, %p261
      %s264 = sadd.s32 %s263, 1
      %p267 = scmp.eq.s32.totalorder %s30, 1
      %p268 = scmp.ne.s32.totalorder %s263, %s265
      %p269 = scmp.eq.s32.totalorder %s30, 0
      %p270 = por %p268, %p269
      %p271 = scmp.ne.s32.totalorder %s263, %s265
      %p272 = scmp.eq.s32.totalorder %s35, 1
      %p273 = por %p271, %p272
      %p274 = scmp.ne.s32.totalorder %s265, %s266
      %p275 = scmp.eq.s32.totalorder %s35, 0
      %p276 = por %p274, %p275
      %p277 = scmp.ne.s32.totalorder %s265, %s266
      %p278 = scmp.eq.s32.totalorder %s36, 1
      %p279 = por %p277, %p278
      %p281 = scmp.ne.s32.totalorder %s266, %s280
      %p282 = scmp.eq.s32.totalorder %s36, 0
      %p283 = por %p281, %p282
      %s285 = sadd.s32 %s284, 1
      %p288 = scmp.eq.s32.totalorder %s30, 1
      %p289 = scmp.ne.s32.totalorder %s284, %s286
      %p290 = scmp.eq.s32.totalorder %s30, 0
      %p291 = por %p289, %p290
      %p292 = scmp.ne.s32.totalorder %s284, %s286
      %p293 = scmp.eq.s32.totalorder %s35, 1
      %p294 = por %p292, %p293
      %p295 = scmp.ne.s32.totalorder %s286, %s287
      %p296 = scmp.eq.s32.totalorder %s35, 0
      %p297 = por %p295, %p296
      %p298 = scmp.ne.s32.totalorder %s286, %s287
      %p299 = scmp.eq.s32.totalorder %s36, 1
      %p300 = por %p298, %p299
      %p302 = scmp.ne.s32.totalorder %s287, %s301
      %p303 = scmp.eq.s32.totalorder %s36, 0
      %p304 = por %p302, %p303
      %s306 = sadd.s32 %s305, 1
      %p309 = scmp.eq.s32.totalorder %s30, 1
      %p310 = scmp.ne.s32.totalorder %s305, %s307
      %p311 = scmp.eq.s32.totalorder %s30, 0
      %p312 = por %p310, %p311
      %p313 = scmp.ne.s32.totalorder %s305, %s307
      %p314 = scmp.eq.s32.totalorder %s35, 1
      %p315 = por %p313, %p314
      %p316 = scmp.ne.s32.totalorder %s307, %s308
      %p317 = scmp.eq.s32.totalorder %s35, 0
      %p318 = por %p316, %p317
      %p319 = scmp.ne.s32.totalorder %s307, %s308
      %p320 = scmp.eq.s32.totalorder %s36, 1
      %p321 = por %p319, %p320
      %p323 = scmp.ne.s32.totalorder %s308, %s322
      %p324 = scmp.eq.s32.totalorder %s36, 0
      %p325 = por %p323, %p324
      %s326 = ssub.s32 %s30, %s37
      %p327 = scmp.eq.s32.totalorder %s326, 0
      %s329 = sadd.s32 %s328, 1
      %s330 = scalar_select %p327, %s328, %s329
      %p333 = pneg %p327
      %p334 = scmp.eq.s32.totalorder %s30, 1
      %p335 = por %p333, %p334
      %p336 = scmp.ne.s32.totalorder %s328, %s331
      %p337 = scmp.eq.s32.totalorder %s30, 0
      %p338 = por %p336, %p337
      %p339 = scmp.ne.s32.totalorder %s328, %s331
      %p340 = scmp.eq.s32.totalorder %s35, 1
      %p341 = por %p339, %p340
      %p342 = scmp.ne.s32.totalorder %s331, %s332
      %p343 = scmp.eq.s32.totalorder %s35, 0
      %p344 = por %p342, %p343
      %p345 = scmp.ne.s32.totalorder %s331, %s332
      %p346 = scmp.eq.s32.totalorder %s36, 1
      %p347 = por %p345, %p346
      %p349 = scmp.ne.s32.totalorder %s332, %s348
      %p350 = scmp.eq.s32.totalorder %s36, 0
      %p351 = por %p349, %p350
      %p352 = scmp.le.s32.totalorder 1, %s30
      %p353 = scmp.lt.s32.totalorder %s30, 3
      %p354 = pnand %p352, %p353
      %p355 = pneg %p354
      // Predicated region
      $region9: #{tpu_custom_call.1} parent=5 // pred_check
        _
      $region10: #{tpu_custom_call.1} parent=5 // pred_check_branch
        %357 = sbr.rel (%p354) target = $region12
      $region11: #{tpu_custom_call.1} parent=5 // pred_region
        %s358 = ssub.s32 %s30, 1
        // Predicated region
        $region13: #{tpu_custom_call.1} parent=11 // pred_check
          %p359 = pneg %p129
        $region14: #{tpu_custom_call.1} parent=11 // pred_check_branch
          %361 = sbr.rel (%p359) target = $region16
        $region15: #{tpu_custom_call.1} parent=11 // pred_region
          %s363 = ssub.s32 1024, 1024
          %364 = vsyncadd [#allocation6], %s363
          %s365 = sshll.u32 [#allocation7], 4
          %s366 = int_to_ptr.vmem [resolvable:$true] %s365
          %371 = dma.hbm_to_vmem [thread:$0]  %s3, 1024, %s366, [#allocation6], 64, 64, 4
        $region16: #{tpu_custom_call.1} parent=11 // pred_fallthru
          _
        // Predicated region
        $region17: #{tpu_custom_call.1} parent=11 // pred_check
          %p372 = pneg %p150
        $region18: #{tpu_custom_call.1} parent=11 // pred_check_branch
          %374 = sbr.rel (%p372) target = $region20
        $region19: #{tpu_custom_call.1} parent=11 // pred_region
          _
        $region20: #{tpu_custom_call.1} parent=11 // pred_fallthru
          _
        // Predicated region
        $region21: #{tpu_custom_call.1} parent=11 // pred_check
          %p375 = pneg %p171
        $region22: #{tpu_custom_call.1} parent=11 // pred_check_branch
          %377 = sbr.rel (%p375) target = $region24
        $region23: #{tpu_custom_call.1} parent=11 // pred_region
          %s379 = ssub.s32 1024, 1024
          %380 = vsyncadd [#allocation9], %s379
          %s381 = sshll.u32 [#allocation8], 4
          %s382 = int_to_ptr.vmem [resolvable:$true] %s381
          %387 = dma.hbm_to_vmem [thread:$0]  %s5, 1024, %s382, [#allocation9], 64, 64, 4
        $region24: #{tpu_custom_call.1} parent=11 // pred_fallthru
          _
        // Predicated region
        $region25: #{tpu_custom_call.1} parent=11 // pred_check
          %p388 = pneg %p192
        $region26: #{tpu_custom_call.1} parent=11 // pred_check_branch
          %390 = sbr.rel (%p388) target = $region28
        $region27: #{tpu_custom_call.1} parent=11 // pred_region
          _
        $region28: #{tpu_custom_call.1} parent=11 // pred_fallthru
          _
        // Predicated region
        $region29: #{tpu_custom_call.1} parent=11 // pred_check
          %p391 = pneg %p213
        $region30: #{tpu_custom_call.1} parent=11 // pred_check_branch
          %393 = sbr.rel (%p391) target = $region32
        $region31: #{tpu_custom_call.1} parent=11 // pred_region
          %s395 = ssub.s32 1024, 1024
          %396 = vsyncadd [#allocation9], %s395
          %s397 = sshll.u32 [#allocation10], 4
          %s398 = int_to_ptr.vmem [resolvable:$true] %s397
          %403 = dma.hbm_to_vmem [thread:$0]  %s7, 1024, %s398, [#allocation9], 64, 64, 4
        $region32: #{tpu_custom_call.1} parent=11 // pred_fallthru
          _
        // Predicated region
        $region33: #{tpu_custom_call.1} parent=11 // pred_check
          %p404 = pneg %p234
        $region34: #{tpu_custom_call.1} parent=11 // pred_check_branch
          %406 = sbr.rel (%p404) target = $region36
        $region35: #{tpu_custom_call.1} parent=11 // pred_region
          _
        $region36: #{tpu_custom_call.1} parent=11 // pred_fallthru
          _
        // Predicated region
        $region37: #{tpu_custom_call.1} parent=11 // pred_check
          %p407 = pneg %p255
        $region38: #{tpu_custom_call.1} parent=11 // pred_check_branch
          %409 = sbr.rel (%p407) target = $region40
        $region39: #{tpu_custom_call.1} parent=11 // pred_region
          %s411 = ssub.s32 1024, 1024
          %412 = vsyncadd [#allocation12], %s411
          %s413 = sshll.u32 [#allocation11], 4
          %s414 = int_to_ptr.vmem [resolvable:$true] %s413
          %419 = dma.hbm_to_vmem [thread:$0]  %s9, 1024, %s414, [#allocation12], 64, 64, 4
        $region40: #{tpu_custom_call.1} parent=11 // pred_fallthru
          _
        // Predicated region
        $region41: #{tpu_custom_call.1} parent=11 // pred_check
          %p420 = pneg %p276
        $region42: #{tpu_custom_call.1} parent=11 // pred_check_branch
          %422 = sbr.rel (%p420) target = $region44
        $region43: #{tpu_custom_call.1} parent=11 // pred_region
          _
        $region44: #{tpu_custom_call.1} parent=11 // pred_fallthru
          _
        // Predicated region
        $region45: #{tpu_custom_call.1} parent=11 // pred_check
          %p423 = pneg %p297
        $region46: #{tpu_custom_call.1} parent=11 // pred_check_branch
          %425 = sbr.rel (%p423) target = $region48
        $region47: #{tpu_custom_call.1} parent=11 // pred_region
          _
        $region48: #{tpu_custom_call.1} parent=11 // pred_fallthru
          _
        // Predicated region
        $region49: #{tpu_custom_call.1} parent=11 // pred_check
          %p426 = pneg %p318
        $region50: #{tpu_custom_call.1} parent=11 // pred_check_branch
          %428 = sbr.rel (%p426) target = $region52
        $region51: #{tpu_custom_call.1} parent=11 // pred_region
          _
        $region52: #{tpu_custom_call.1} parent=11 // pred_fallthru
          _
      $region12: #{tpu_custom_call.1} parent=5 // pred_fallthru
        _
      %p429 = scmp.lt.s32.totalorder %s30, 2
      // Predicated region
      $region53: #{tpu_custom_call.1} parent=5 // pred_check
        %p430 = pneg %p429
      $region54: #{tpu_custom_call.1} parent=5 // pred_check_branch
        %432 = sbr.rel (%p430) target = $region56
      $region55: #{tpu_custom_call.1} parent=5 // pred_region
        // Predicated region
        $region57: #{tpu_custom_call.1} parent=55 // pred_check
          %p433 = pneg %p50
        $region58: #{tpu_custom_call.1} parent=55 // pred_check_branch
          %435 = sbr.rel (%p433) target = $region60
        $region59: #{tpu_custom_call.1} parent=55 // pred_region
          %s436 = sand.u32 %s40, 1
          %s437 = scalar_lea.sflag [#allocation3], %s436
          %s438 = sand.u32 %s40, 1
          %s439 = smul.addr %s438, 8
          %s440 = scalar_lea.vmem [#allocation2], %s439
          %s442 = ssub.s32 128, 128
          %443 = vsyncadd %s437, %s442
          %s444 = smul.addr %s30, 128
          %s445 = scalar_lea.hbm %s0, %s444
          %s447 = sshll.u32 %s440, 4
          %s448 = int_to_ptr.vmem [resolvable:$true] %s447
          %450 = dma.hbm_to_vmem [thread:$0]  %s445, 128, %s448, %s437
        $region60: #{tpu_custom_call.1} parent=55 // pred_fallthru
          _
        // Predicated region
        $region61: #{tpu_custom_call.1} parent=55 // pred_check
          %p451 = pneg %p76
        $region62: #{tpu_custom_call.1} parent=55 // pred_check_branch
          %453 = sbr.rel (%p451) target = $region64
        $region63: #{tpu_custom_call.1} parent=55 // pred_region
          %s454 = sand.u32 %s30, 1
          %s455 = scalar_lea.sflag [#allocation6], %s454
          %s456 = sand.u32 %s66, 1
          %s457 = smul.addr %s456, 64
          %s458 = scalar_lea.vmem [#allocation5], %s457
          %s460 = ssub.s32 1024, 1024
          %461 = vsyncadd %s455, %s460
          %s462 = smul.addr %s30, 16
          %s463 = smul.addr %s462, 64
          %s464 = scalar_lea.hbm %s1, %s463
          %s465 = sshll.u32 %s458, 4
          %s466 = int_to_ptr.vmem [resolvable:$true] %s465
          %471 = dma.hbm_to_vmem [thread:$0]  %s464, 1024, %s466, %s455, 64, 64, 4
        $region64: #{tpu_custom_call.1} parent=55 // pred_fallthru
          _
        // Predicated region
        $region65: #{tpu_custom_call.1} parent=55 // pred_check
          %p472 = pneg %p102
        $region66: #{tpu_custom_call.1} parent=55 // pred_check_branch
          %474 = sbr.rel (%p472) target = $region68
        $region67: #{tpu_custom_call.1} parent=55 // pred_region
          %p475 = scmp.lt.s32.totalorder %s30, 1
          %s476 = scalar_select %p475, %s30, 1
          %s477 = scalar_lea.vmem %s2, %s476
        $region68: #{tpu_custom_call.1} parent=55 // pred_fallthru
          _
      $region56: #{tpu_custom_call.1} parent=5 // pred_fallthru
        _
      %p478 = scmp.le.s32.totalorder 1, %s30
      %p479 = scmp.lt.s32.totalorder %s30, 3
      %p480 = pnand %p478, %p479
      %p481 = pneg %p480
      // Predicated region
      $region69: #{tpu_custom_call.1} parent=5 // pred_check
        _
      $region70: #{tpu_custom_call.1} parent=5 // pred_check_branch
        %483 = sbr.rel (%p480) target = $region72
      $region71: #{tpu_custom_call.1} parent=5 // pred_region
        %s484 = ssub.s32 %s30, 1
        %s485 = sand.u32 %s43, 1
        %s486 = scalar_lea.sflag [#allocation3], %s485
        %s487 = sand.u32 %s43, 1
        %s488 = smul.addr %s487, 8
        %s489 = scalar_lea.vmem [#allocation2], %s488
        // Predicated region
        $region73: #{tpu_custom_call.1} parent=71 // pred_check
          %p490 = pneg %p56
        $region74: #{tpu_custom_call.1} parent=71 // pred_check_branch
          %492 = sbr.rel (%p490) target = $region76
        $region75: #{tpu_custom_call.1} parent=71 // pred_region
          %493 = dma.done %s486, 128
        $region76: #{tpu_custom_call.1} parent=71 // pred_fallthru
          _
        %s494 = sand.u32 %s35, 1
        %s495 = scalar_lea.sflag [#allocation6], %s494
        %s496 = sand.u32 %s69, 1
        %s497 = smul.addr %s496, 64
        %s498 = scalar_lea.vmem [#allocation5], %s497
        // Predicated region
        $region77: #{tpu_custom_call.1} parent=71 // pred_check
          %p499 = pneg %p82
        $region78: #{tpu_custom_call.1} parent=71 // pred_check_branch
          %501 = sbr.rel (%p499) target = $region80
        $region79: #{tpu_custom_call.1} parent=71 // pred_region
          %502 = dma.done %s495, 1024
        $region80: #{tpu_custom_call.1} parent=71 // pred_fallthru
          _
        // Predicated region
        $region81: #{tpu_custom_call.1} parent=71 // pred_check
          %p503 = pneg %p129
        $region82: #{tpu_custom_call.1} parent=71 // pred_check_branch
          %505 = sbr.rel (%p503) target = $region84
        $region83: #{tpu_custom_call.1} parent=71 // pred_region
          %506 = dma.done [#allocation6], 1024
        $region84: #{tpu_custom_call.1} parent=71 // pred_fallthru
          _
        // Predicated region
        $region85: #{tpu_custom_call.1} parent=71 // pred_check
          %p507 = pneg %p171
        $region86: #{tpu_custom_call.1} parent=71 // pred_check_branch
          %509 = sbr.rel (%p507) target = $region88
        $region87: #{tpu_custom_call.1} parent=71 // pred_region
          %510 = dma.done [#allocation9], 1024
        $region88: #{tpu_custom_call.1} parent=71 // pred_fallthru
          _
        // Predicated region
        $region89: #{tpu_custom_call.1} parent=71 // pred_check
          %p511 = pneg %p213
        $region90: #{tpu_custom_call.1} parent=71 // pred_check_branch
          %513 = sbr.rel (%p511) target = $region92
        $region91: #{tpu_custom_call.1} parent=71 // pred_region
          %514 = dma.done [#allocation9], 1024
        $region92: #{tpu_custom_call.1} parent=71 // pred_fallthru
          _
        // Predicated region
        $region93: #{tpu_custom_call.1} parent=71 // pred_check
          %p515 = pneg %p255
        $region94: #{tpu_custom_call.1} parent=71 // pred_check_branch
          %517 = sbr.rel (%p515) target = $region96
        $region95: #{tpu_custom_call.1} parent=71 // pred_region
          %518 = dma.done [#allocation12], 1024
        $region96: #{tpu_custom_call.1} parent=71 // pred_fallthru
          _
        %s519 = sand.u32 %s43, 1
        %s520 = scalar_lea.sflag [#allocation3], %s519
        %s521 = sand.u32 %s43, 1
        %s522 = smul.addr %s521, 8
        %s523 = scalar_lea.vmem [#allocation2], %s522
        %p524 = pneg %p56
        %p525 = pneg %p53
        %s526 = sand.u32 %s35, 1
        %s527 = scalar_lea.sflag [#allocation6], %s526
        %s528 = sand.u32 %s69, 1
        %s529 = smul.addr %s528, 64
        %s530 = scalar_lea.vmem [#allocation5], %s529
        %p531 = pneg %p82
        %p532 = pneg %p79
        %p533 = scmp.lt.s32.totalorder %s35, 1
        %s534 = scalar_select %p533, %s35, 1
        %s535 = scalar_lea.vmem %s2, %s534
        %p536 = pneg %p108
        %p537 = pneg %p105
        %p538 = pneg %p129
        %p539 = pneg %p126
        %p540 = pneg %p150
        %p541 = pneg %p147
        %p542 = pneg %p171
        %p543 = pneg %p168
        %p544 = pneg %p192
        %p545 = pneg %p189
        %p546 = pneg %p213
        %p547 = pneg %p210
        %p548 = pneg %p234
        %p549 = pneg %p231
        %p550 = pneg %p255
        %p551 = pneg %p252
        %p552 = pneg %p276
        %p553 = pneg %p273
        %p554 = pneg %p297
        %p555 = pneg %p294
        %p556 = pneg %p318
        %p557 = pneg %p315
        %p558 = pneg %p344
        %p559 = pneg %p341
        %s560 = sand.u32 %s331, 1
        %s561 = scalar_lea.sflag [#allocation4], %s560
        %s562 = sand.u32 %s331, 1
        %s563 = smul.addr %s562, 8
        %s564 = scalar_lea.vmem [#allocation13], %s563
        %p565 = scmp.lt.s32.totalorder %s35, 1
        %s566 = scalar_select %p565, %s35, 1
        %s567 = scalar_lea.vmem %s2, %s566
        %v569 = vld [vmem:[%s489] sm:$0xff]
        %v570 = vpack.c.bf16 %v569, %v569
        %v571 = vld [vmem:[%s498] sm:$0xf]
        %v572 = vld [vmem:[%s498 + $0x4] sm:$0xf]
        %v573 = vld [vmem:[%s498 + $0x8] sm:$0xf]
        %v574 = vld [vmem:[%s498 + $0xc] sm:$0xf]
        %v575 = vld [vmem:[%s498 + $0x10] sm:$0xf]
        %v576 = vld [vmem:[%s498 + $0x14] sm:$0xf]
        %v577 = vld [vmem:[%s498 + $0x18] sm:$0xf]
        %v578 = vld [vmem:[%s498 + $0x1c] sm:$0xf]
        %v579 = vld [vmem:[%s498 + $0x20] sm:$0xf]
        %v580 = vld [vmem:[%s498 + $0x24] sm:$0xf]
        %v581 = vld [vmem:[%s498 + $0x28] sm:$0xf]
        %v582 = vld [vmem:[%s498 + $0x2c] sm:$0xf]
        %v583 = vld [vmem:[%s498 + $0x30] sm:$0xf]
        %v584 = vld [vmem:[%s498 + $0x34] sm:$0xf]
        %v585 = vld [vmem:[%s498 + $0x38] sm:$0xf]
        %v586 = vld [vmem:[%s498 + $0x3c] sm:$0xf]
        %v587 = vld [vmem:[#allocation7] sm:$0xf]
        %v588 = vld [vmem:[#allocation7 + $0x4] sm:$0xf]
        %v589 = vld [vmem:[#allocation7 + $0x8] sm:$0xf]
        %v590 = vld [vmem:[#allocation7 + $0xc] sm:$0xf]
        %v591 = vld [vmem:[#allocation7 + $0x10] sm:$0xf]
        %v592 = vld [vmem:[#allocation7 + $0x14] sm:$0xf]
        %v593 = vld [vmem:[#allocation7 + $0x18] sm:$0xf]
        %v594 = vld [vmem:[#allocation7 + $0x1c] sm:$0xf]
        %v595 = vld [vmem:[#allocation7 + $0x20] sm:$0xf]
        %v596 = vld [vmem:[#allocation7 + $0x24] sm:$0xf]
        %v597 = vld [vmem:[#allocation7 + $0x28] sm:$0xf]
        %v598 = vld [vmem:[#allocation7 + $0x2c] sm:$0xf]
        %v599 = vld [vmem:[#allocation7 + $0x30] sm:$0xf]
        %v600 = vld [vmem:[#allocation7 + $0x34] sm:$0xf]
        %v601 = vld [vmem:[#allocation7 + $0x38] sm:$0xf]
        %v602 = vld [vmem:[#allocation7 + $0x3c] sm:$0xf]
        %v603 = vld [vmem:[%s4] sm:$0x1]
        %v605 = vlaneseq
        %v606 = vshrl.u32 %v605, 7
        %v607 = vsub.s32 0, %v606
        %v608 = vrot.slane %v603, %v607
        %v626 = vunpack.c.l.b16 %v587
        %v627 = vunpack.c.l.b16 %v588
        %v628 = vunpack.c.l.b16 %v589
        %v629 = vunpack.c.l.b16 %v590
        %v630 = vunpack.c.l.b16 %v591
        %v631 = vunpack.c.l.b16 %v592
        %v632 = vunpack.c.l.b16 %v593
        %v633 = vunpack.c.l.b16 %v594
        %v634 = vunpack.c.l.b16 %v595
        %v635 = vunpack.c.l.b16 %v596
        %v636 = vunpack.c.l.b16 %v597
        %v637 = vunpack.c.l.b16 %v598
        %v638 = vunpack.c.l.b16 %v599
        %v639 = vunpack.c.l.b16 %v600
        %v640 = vunpack.c.l.b16 %v601
        %v641 = vunpack.c.l.b16 %v602
        %v642 = vpack.c.b16 %v627, %v626
        %v643 = vpack.c.b16 %v629, %v628
        %v644 = vpack.c.b16 %v631, %v630
        %v645 = vpack.c.b16 %v633, %v632
        %v646 = vpack.c.b16 %v635, %v634
        %v647 = vpack.c.b16 %v637, %v636
        %v648 = vpack.c.b16 %v639, %v638
        %v649 = vpack.c.b16 %v641, %v640
        %658 = vmatprep.subr.bf16.mxu0 0
        %659 = vmatpush1.bf16.msra.mxu0 %v642
        %660 = vmatprep.subr.bf16.mxu0 0
        %661 = vmatpush1.bf16.msra.mxu0 %v643
        %662 = vmatprep.subr.bf16.mxu0 0
        %663 = vmatpush1.bf16.msra.mxu0 %v644
        %664 = vmatprep.subr.bf16.mxu0 0
        %665 = vmatpush1.bf16.msra.mxu0 %v645
        %666 = vmatprep.subr.bf16.mxu0 0
        %667 = vmatpush1.bf16.msra.mxu0 %v646
        %668 = vmatprep.subr.bf16.mxu0 0
        %669 = vmatpush1.bf16.msra.mxu0 %v647
        %670 = vmatprep.subr.bf16.mxu0 0
        %671 = vmatpush1.bf16.msra.mxu0 %v648
        %672 = vmatprep.subr.bf16.mxu0 0
        %673 = vmatpush1.bf16.msra.mxu0 %v649
        %674 = vmatprep.subr.bf16.mxu0 0
        %675 = vmatpush1.bf16.msra.mxu0 0
        %676 = vmatprep.subr.bf16.mxu0 0
        %677 = vmatpush1.bf16.msra.mxu0 0
        %678 = vmatprep.subr.bf16.mxu0 0
        %679 = vmatpush1.bf16.msra.mxu0 0
        %680 = vmatprep.subr.bf16.mxu0 0
        %681 = vmatpush1.bf16.msra.mxu0 0
        %682 = vmatprep.subr.bf16.mxu0 0
        %683 = vmatpush1.bf16.msra.mxu0 0
        %684 = vmatprep.subr.bf16.mxu0 0
        %685 = vmatpush1.bf16.msra.mxu0 0
        %686 = vmatprep.subr.bf16.mxu0 0
        %687 = vmatpush1.bf16.msra.mxu0 0
        %688 = vmatprep.subr.bf16.mxu0 0
        %689 = vmatpush1.bf16.msra.mxu0 0
        %690 = vmatprep.mubr.bf16.mxu0 0
        %691 = vmatmul.mubr.bf16.gmra.mrb[0].mxu0 %v570
        %v692 = vpop.f32.mrb[0].mxu0
        %v693 = vadd.f32 %v608, %v692
        %v694 = vpop.f32.mrb[0].mxu0
        %v695 = vpop.f32.mrb[0].mxu0
        %v696 = vpop.f32.mrb[0].mxu0
        %697 = vdwg.mxu0
        %v698 = vld [vmem:[#allocation8] sm:$0xf]
        %v699 = vld [vmem:[#allocation8 + $0x4] sm:$0xf]
        %v700 = vld [vmem:[#allocation8 + $0x8] sm:$0xf]
        %v701 = vld [vmem:[#allocation8 + $0xc] sm:$0xf]
        %v702 = vld [vmem:[#allocation8 + $0x10] sm:$0xf]
        %v703 = vld [vmem:[#allocation8 + $0x14] sm:$0xf]
        %v704 = vld [vmem:[#allocation8 + $0x18] sm:$0xf]
        %v705 = vld [vmem:[#allocation8 + $0x1c] sm:$0xf]
        %v706 = vld [vmem:[#allocation8 + $0x20] sm:$0xf]
        %v707 = vld [vmem:[#allocation8 + $0x24] sm:$0xf]
        %v708 = vld [vmem:[#allocation8 + $0x28] sm:$0xf]
        %v709 = vld [vmem:[#allocation8 + $0x2c] sm:$0xf]
        %v710 = vld [vmem:[#allocation8 + $0x30] sm:$0xf]
        %v711 = vld [vmem:[#allocation8 + $0x34] sm:$0xf]
        %v712 = vld [vmem:[#allocation8 + $0x38] sm:$0xf]
        %v713 = vld [vmem:[#allocation8 + $0x3c] sm:$0xf]
        %v714 = vld [vmem:[%s6] sm:$0x1]
        %v716 = vlaneseq
        %v717 = vshrl.u32 %v716, 7
        %v718 = vsub.s32 0, %v717
        %v719 = vrot.slane %v714, %v718
        %v737 = vunpack.c.l.b16 %v571
        %v738 = vunpack.c.l.b16 %v572
        %v739 = vunpack.c.l.b16 %v573
        %v740 = vunpack.c.l.b16 %v574
        %v741 = vunpack.c.l.b16 %v575
        %v742 = vunpack.c.l.b16 %v576
        %v743 = vunpack.c.l.b16 %v577
        %v744 = vunpack.c.l.b16 %v578
        %v745 = vunpack.c.l.b16 %v579
        %v746 = vunpack.c.l.b16 %v580
        %v747 = vunpack.c.l.b16 %v581
        %v748 = vunpack.c.l.b16 %v582
        %v749 = vunpack.c.l.b16 %v583
        %v750 = vunpack.c.l.b16 %v584
        %v751 = vunpack.c.l.b16 %v585
        %v752 = vunpack.c.l.b16 %v586
        %v753 = vpack.c.b16 %v738, %v737
        %v754 = vpack.c.b16 %v740, %v739
        %v755 = vpack.c.b16 %v742, %v741
        %v756 = vpack.c.b16 %v744, %v743
        %v757 = vpack.c.b16 %v746, %v745
        %v758 = vpack.c.b16 %v748, %v747
        %v759 = vpack.c.b16 %v750, %v749
        %v760 = vpack.c.b16 %v752, %v751
        %v785 = vunpack.c.l.b16 %v698
        %v786 = vunpack.c.l.b16 %v699
        %v787 = vunpack.c.l.b16 %v700
        %v788 = vunpack.c.l.b16 %v701
        %v789 = vunpack.c.l.b16 %v702
        %v790 = vunpack.c.l.b16 %v703
        %v791 = vunpack.c.l.b16 %v704
        %v792 = vunpack.c.l.b16 %v705
        %v793 = vunpack.c.l.b16 %v706
        %v794 = vunpack.c.l.b16 %v707
        %v795 = vunpack.c.l.b16 %v708
        %v796 = vunpack.c.l.b16 %v709
        %v797 = vunpack.c.l.b16 %v710
        %v798 = vunpack.c.l.b16 %v711
        %v799 = vunpack.c.l.b16 %v712
        %v800 = vunpack.c.l.b16 %v713
        %v801 = vpack.c.b16 %v786, %v785
        %v802 = vpack.c.b16 %v788, %v787
        %v803 = vpack.c.b16 %v790, %v789
        %v804 = vpack.c.b16 %v792, %v791
        %v805 = vpack.c.b16 %v794, %v793
        %v806 = vpack.c.b16 %v796, %v795
        %v807 = vpack.c.b16 %v798, %v797
        %v808 = vpack.c.b16 %v800, %v799
        %817 = vmatprep.subr.bf16.mxu0 0
        %818 = vmatpush1.bf16.msra.mxu0 %v801
        %819 = vmatprep.subr.bf16.mxu0 0
        %820 = vmatpush1.bf16.msra.mxu0 %v802
        %821 = vmatprep.subr.bf16.mxu0 0
        %822 = vmatpush1.bf16.msra.mxu0 %v803
        %823 = vmatprep.subr.bf16.mxu0 0
        %824 = vmatpush1.bf16.msra.mxu0 %v804
        %825 = vmatprep.subr.bf16.mxu0 0
        %826 = vmatpush1.bf16.msra.mxu0 %v805
        %827 = vmatprep.subr.bf16.mxu0 0
        %828 = vmatpush1.bf16.msra.mxu0 %v806
        %829 = vmatprep.subr.bf16.mxu0 0
        %830 = vmatpush1.bf16.msra.mxu0 %v807
        %831 = vmatprep.subr.bf16.mxu0 0
        %832 = vmatpush1.bf16.msra.mxu0 %v808
        %833 = vmatprep.subr.bf16.mxu0 0
        %834 = vmatpush1.bf16.msra.mxu0 0
        %835 = vmatprep.subr.bf16.mxu0 0
        %836 = vmatpush1.bf16.msra.mxu0 0
        %837 = vmatprep.subr.bf16.mxu0 0
        %838 = vmatpush1.bf16.msra.mxu0 0
        %839 = vmatprep.subr.bf16.mxu0 0
        %840 = vmatpush1.bf16.msra.mxu0 0
        %841 = vmatprep.subr.bf16.mxu0 0
        %842 = vmatpush1.bf16.msra.mxu0 0
        %843 = vmatprep.subr.bf16.mxu0 0
        %844 = vmatpush1.bf16.msra.mxu0 0
        %845 = vmatprep.subr.bf16.mxu0 0
        %846 = vmatpush1.bf16.msra.mxu0 0
        %847 = vmatprep.subr.bf16.mxu0 0
        %848 = vmatpush1.bf16.msra.mxu0 0
        %849 = vmatprep.mubr.bf16.mxu0 0
        %850 = vmatmul.mubr.bf16.gmra.mrb[0].mxu0 %v753
        %v851 = vpop.f32.mrb[0].mxu0
        %v852 = vadd.f32 %v719, %v851
        %v853 = vpop.f32.mrb[0].mxu0
        %v854 = vpop.f32.mrb[0].mxu0
        %v855 = vadd.f32 %v719, %v854
        %v856 = vpop.f32.mrb[0].mxu0
        %857 = vmatprep.mubr.bf16.mxu0 0
        %858 = vmatmul.mubr.bf16.gmra.mrb[0].mxu0 %v754
        %v859 = vpop.f32.mrb[0].mxu0
        %v860 = vadd.f32 %v719, %v859
        %v861 = vpop.f32.mrb[0].mxu0
        %v862 = vpop.f32.mrb[0].mxu0
        %v863 = vadd.f32 %v719, %v862
        %v864 = vpop.f32.mrb[0].mxu0
        %865 = vmatprep.mubr.bf16.mxu0 0
        %866 = vmatmul.mubr.bf16.gmra.mrb[0].mxu0 %v755
        %v867 = vpop.f32.mrb[0].mxu0
        %v868 = vadd.f32 %v719, %v867
        %v869 = vpop.f32.mrb[0].mxu0
        %v870 = vpop.f32.mrb[0].mxu0
        %v871 = vadd.f32 %v719, %v870
        %v872 = vpop.f32.mrb[0].mxu0
        %873 = vmatprep.mubr.bf16.mxu0 0
        %874 = vmatmul.mubr.bf16.gmra.mrb[0].mxu0 %v756
        %v875 = vpop.f32.mrb[0].mxu0
        %v876 = vadd.f32 %v719, %v875
        %v877 = vpop.f32.mrb[0].mxu0
        %v878 = vpop.f32.mrb[0].mxu0
        %v879 = vadd.f32 %v719, %v878
        %v880 = vpop.f32.mrb[0].mxu0
        %881 = vmatprep.mubr.bf16.mxu0 0
        %882 = vmatmul.mubr.bf16.gmra.mrb[0].mxu0 %v757
        %v883 = vpop.f32.mrb[0].mxu0
        %v884 = vadd.f32 %v719, %v883
        %v885 = vpop.f32.mrb[0].mxu0
        %v886 = vpop.f32.mrb[0].mxu0
        %v887 = vadd.f32 %v719, %v886
        %v888 = vpop.f32.mrb[0].mxu0
        %889 = vmatprep.mubr.bf16.mxu0 0
        %890 = vmatmul.mubr.bf16.gmra.mrb[0].mxu0 %v758
        %v891 = vpop.f32.mrb[0].mxu0
        %v892 = vadd.f32 %v719, %v891
        %v893 = vpop.f32.mrb[0].mxu0
        %v894 = vpop.f32.mrb[0].mxu0
        %v895 = vadd.f32 %v719, %v894
        %v896 = vpop.f32.mrb[0].mxu0
        %897 = vmatprep.mubr.bf16.mxu0 0
        %898 = vmatmul.mubr.bf16.gmra.mrb[0].mxu0 %v759
        %v899 = vpop.f32.mrb[0].mxu0
        %v900 = vadd.f32 %v719, %v899
        %v901 = vpop.f32.mrb[0].mxu0
        %v902 = vpop.f32.mrb[0].mxu0
        %v903 = vadd.f32 %v719, %v902
        %v904 = vpop.f32.mrb[0].mxu0
        %905 = vmatprep.mubr.bf16.mxu0 0
        %906 = vmatmul.mubr.bf16.gmra.mrb[0].mxu0 %v760
        %v907 = vpop.f32.mrb[0].mxu0
        %v908 = vadd.f32 %v719, %v907
        %v909 = vpop.f32.mrb[0].mxu0
        %v910 = vpop.f32.mrb[0].mxu0
        %v911 = vadd.f32 %v719, %v910
        %v912 = vpop.f32.mrb[0].mxu0
        %913 = vdwg.mxu0
        %v914 = vld [vmem:[#allocation10] sm:$0xf]
        %v915 = vld [vmem:[#allocation10 + $0x4] sm:$0xf]
        %v916 = vld [vmem:[#allocation10 + $0x8] sm:$0xf]
        %v917 = vld [vmem:[#allocation10 + $0xc] sm:$0xf]
        %v918 = vld [vmem:[#allocation10 + $0x10] sm:$0xf]
        %v919 = vld [vmem:[#allocation10 + $0x14] sm:$0xf]
        %v920 = vld [vmem:[#allocation10 + $0x18] sm:$0xf]
        %v921 = vld [vmem:[#allocation10 + $0x1c] sm:$0xf]
        %v922 = vld [vmem:[#allocation10 + $0x20] sm:$0xf]
        %v923 = vld [vmem:[#allocation10 + $0x24] sm:$0xf]
        %v924 = vld [vmem:[#allocation10 + $0x28] sm:$0xf]
        %v925 = vld [vmem:[#allocation10 + $0x2c] sm:$0xf]
        %v926 = vld [vmem:[#allocation10 + $0x30] sm:$0xf]
        %v927 = vld [vmem:[#allocation10 + $0x34] sm:$0xf]
        %v928 = vld [vmem:[#allocation10 + $0x38] sm:$0xf]
        %v929 = vld [vmem:[#allocation10 + $0x3c] sm:$0xf]
        %v930 = vld [vmem:[%s8] sm:$0x1]
        %v932 = vlaneseq
        %v933 = vshrl.u32 %v932, 7
        %v934 = vsub.s32 0, %v933
        %v935 = vrot.slane %v930, %v934
        %v953 = vunpack.c.l.b16 %v914
        %v954 = vunpack.c.l.b16 %v915
        %v955 = vunpack.c.l.b16 %v916
        %v956 = vunpack.c.l.b16 %v917
        %v957 = vunpack.c.l.b16 %v918
        %v958 = vunpack.c.l.b16 %v919
        %v959 = vunpack.c.l.b16 %v920
        %v960 = vunpack.c.l.b16 %v921
        %v961 = vunpack.c.l.b16 %v922
        %v962 = vunpack.c.l.b16 %v923
        %v963 = vunpack.c.l.b16 %v924
        %v964 = vunpack.c.l.b16 %v925
        %v965 = vunpack.c.l.b16 %v926
        %v966 = vunpack.c.l.b16 %v927
        %v967 = vunpack.c.l.b16 %v928
        %v968 = vunpack.c.l.b16 %v929
        %v969 = vpack.c.b16 %v954, %v953
        %v970 = vpack.c.b16 %v956, %v955
        %v971 = vpack.c.b16 %v958, %v957
        %v972 = vpack.c.b16 %v960, %v959
        %v973 = vpack.c.b16 %v962, %v961
        %v974 = vpack.c.b16 %v964, %v963
        %v975 = vpack.c.b16 %v966, %v965
        %v976 = vpack.c.b16 %v968, %v967
        %985 = vmatprep.subr.bf16.mxu0 0
        %986 = vmatpush1.bf16.msra.mxu0 %v969
        %987 = vmatprep.subr.bf16.mxu0 0
        %988 = vmatpush1.bf16.msra.mxu0 %v970
        %989 = vmatprep.subr.bf16.mxu0 0
        %990 = vmatpush1.bf16.msra.mxu0 %v971
        %991 = vmatprep.subr.bf16.mxu0 0
        %992 = vmatpush1.bf16.msra.mxu0 %v972
        %993 = vmatprep.subr.bf16.mxu0 0
        %994 = vmatpush1.bf16.msra.mxu0 %v973
        %995 = vmatprep.subr.bf16.mxu0 0
        %996 = vmatpush1.bf16.msra.mxu0 %v974
        %997 = vmatprep.subr.bf16.mxu0 0
        %998 = vmatpush1.bf16.msra.mxu0 %v975
        %999 = vmatprep.subr.bf16.mxu0 0
        %1000 = vmatpush1.bf16.msra.mxu0 %v976
        %1001 = vmatprep.subr.bf16.mxu0 0
        %1002 = vmatpush1.bf16.msra.mxu0 0
        %1003 = vmatprep.subr.bf16.mxu0 0
        %1004 = vmatpush1.bf16.msra.mxu0 0
        %1005 = vmatprep.subr.bf16.mxu0 0
        %1006 = vmatpush1.bf16.msra.mxu0 0
        %1007 = vmatprep.subr.bf16.mxu0 0
        %1008 = vmatpush1.bf16.msra.mxu0 0
        %1009 = vmatprep.subr.bf16.mxu0 0
        %1010 = vmatpush1.bf16.msra.mxu0 0
        %1011 = vmatprep.subr.bf16.mxu0 0
        %1012 = vmatpush1.bf16.msra.mxu0 0
        %1013 = vmatprep.subr.bf16.mxu0 0
        %1014 = vmatpush1.bf16.msra.mxu0 0
        %1015 = vmatprep.subr.bf16.mxu0 0
        %1016 = vmatpush1.bf16.msra.mxu0 0
        %1017 = vmatprep.mubr.bf16.mxu0 0
        %1018 = vmatmul.mubr.bf16.gmra.mrb[0].mxu0 %v753
        %v1019 = vpop.f32.mrb[0].mxu0
        %v1020 = vadd.f32 %v935, %v1019
        %v1021 = vpop.f32.mrb[0].mxu0
        %v1022 = vpop.f32.mrb[0].mxu0
        %v1023 = vadd.f32 %v935, %v1022
        %v1024 = vpop.f32.mrb[0].mxu0
        %1025 = vmatprep.mubr.bf16.mxu0 0
        %1026 = vmatmul.mubr.bf16.gmra.mrb[0].mxu0 %v754
        %v1027 = vpop.f32.mrb[0].mxu0
        %v1028 = vadd.f32 %v935, %v1027
        %v1029 = vpop.f32.mrb[0].mxu0
        %v1030 = vpop.f32.mrb[0].mxu0
        %v1031 = vadd.f32 %v935, %v1030
        %v1032 = vpop.f32.mrb[0].mxu0
        %1033 = vmatprep.mubr.bf16.mxu0 0
        %1034 = vmatmul.mubr.bf16.gmra.mrb[0].mxu0 %v755
        %v1035 = vpop.f32.mrb[0].mxu0
        %v1036 = vadd.f32 %v935, %v1035
        %v1037 = vpop.f32.mrb[0].mxu0
        %v1038 = vpop.f32.mrb[0].mxu0
        %v1039 = vadd.f32 %v935, %v1038
        %v1040 = vpop.f32.mrb[0].mxu0
        %1041 = vmatprep.mubr.bf16.mxu0 0
        %1042 = vmatmul.mubr.bf16.gmra.mrb[0].mxu0 %v756
        %v1043 = vpop.f32.mrb[0].mxu0
        %v1044 = vadd.f32 %v935, %v1043
        %v1045 = vpop.f32.mrb[0].mxu0
        %v1046 = vpop.f32.mrb[0].mxu0
        %v1047 = vadd.f32 %v935, %v1046
        %v1048 = vpop.f32.mrb[0].mxu0
        %1049 = vmatprep.mubr.bf16.mxu0 0
        %1050 = vmatmul.mubr.bf16.gmra.mrb[0].mxu0 %v757
        %v1051 = vpop.f32.mrb[0].mxu0
        %v1052 = vadd.f32 %v935, %v1051
        %v1053 = vpop.f32.mrb[0].mxu0
        %v1054 = vpop.f32.mrb[0].mxu0
        %v1055 = vadd.f32 %v935, %v1054
        %v1056 = vpop.f32.mrb[0].mxu0
        %1057 = vmatprep.mubr.bf16.mxu0 0
        %1058 = vmatmul.mubr.bf16.gmra.mrb[0].mxu0 %v758
        %v1059 = vpop.f32.mrb[0].mxu0
        %v1060 = vadd.f32 %v935, %v1059
        %v1061 = vpop.f32.mrb[0].mxu0
        %v1062 = vpop.f32.mrb[0].mxu0
        %v1063 = vadd.f32 %v935, %v1062
        %v1064 = vpop.f32.mrb[0].mxu0
        %1065 = vmatprep.mubr.bf16.mxu0 0
        %1066 = vmatmul.mubr.bf16.gmra.mrb[0].mxu0 %v759
        %v1067 = vpop.f32.mrb[0].mxu0
        %v1068 = vadd.f32 %v935, %v1067
        %v1069 = vpop.f32.mrb[0].mxu0
        %v1070 = vpop.f32.mrb[0].mxu0
        %v1071 = vadd.f32 %v935, %v1070
        %v1072 = vpop.f32.mrb[0].mxu0
        %1073 = vmatprep.mubr.bf16.mxu0 0
        %1074 = vmatmul.mubr.bf16.gmra.mrb[0].mxu0 %v760
        %v1075 = vpop.f32.mrb[0].mxu0
        %v1076 = vadd.f32 %v935, %v1075
        %v1077 = vpop.f32.mrb[0].mxu0
        %v1078 = vpop.f32.mrb[0].mxu0
        %v1079 = vadd.f32 %v935, %v1078
        %v1080 = vpop.f32.mrb[0].mxu0
        %1081 = vdwg.mxu0
        %v1082 = vpack.c.bf16 %v693, %v693
        %v1083 = vpack.c.bf16 %v855, %v852
        %v1084 = vpack.c.bf16 %v863, %v860
        %v1085 = vpack.c.bf16 %v871, %v868
        %v1086 = vpack.c.bf16 %v879, %v876
        %v1087 = vpack.c.bf16 %v887, %v884
        %v1088 = vpack.c.bf16 %v895, %v892
        %v1089 = vpack.c.bf16 %v903, %v900
        %v1090 = vpack.c.bf16 %v911, %v908
        %v1091 = vpack.c.bf16 %v1023, %v1020
        %v1092 = vpack.c.bf16 %v1031, %v1028
        %v1093 = vpack.c.bf16 %v1039, %v1036
        %v1094 = vpack.c.bf16 %v1047, %v1044
        %v1095 = vpack.c.bf16 %v1055, %v1052
        %v1096 = vpack.c.bf16 %v1063, %v1060
        %v1097 = vpack.c.bf16 %v1071, %v1068
        %v1098 = vpack.c.bf16 %v1079, %v1076
        %v1099 = vld [vmem:[%s567] sm:$0x1]
        %v1100 = vmul.f32 %v1099, -1e+15
        %1101 = vmatprep.subr.bf16.mxu0 0
        %1102 = vmatpush1.bf16.xpose.msra.mxu0 %v1083
        %1103 = vmatprep.subr.bf16.mxu0 0
        %1104 = vmatpush1.bf16.xpose.msra.mxu0 %v1084
        %1105 = vmatprep.subr.bf16.mxu0 0
        %1106 = vmatpush1.bf16.xpose.msra.mxu0 %v1085
        %1107 = vmatprep.subr.bf16.mxu0 0
        %1108 = vmatpush1.bf16.xpose.msra.mxu0 %v1086
        %1109 = vmatprep.subr.bf16.mxu0 0
        %1110 = vmatpush1.bf16.xpose.msra.mxu0 %v1087
        %1111 = vmatprep.subr.bf16.mxu0 0
        %1112 = vmatpush1.bf16.xpose.msra.mxu0 %v1088
        %1113 = vmatprep.subr.bf16.mxu0 0
        %1114 = vmatpush1.bf16.xpose.msra.mxu0 %v1089
        %1115 = vmatprep.subr.bf16.mxu0 0
        %1116 = vmatpush1.bf16.xpose.msra.mxu0 %v1090
        %1117 = vmatprep.subr.bf16.mxu0 0
        %1118 = vmatpush1.bf16.xpose.msra.mxu0 0
        %1119 = vmatprep.subr.bf16.mxu0 0
        %1120 = vmatpush1.bf16.xpose.msra.mxu0 0
        %1121 = vmatprep.subr.bf16.mxu0 0
        %1122 = vmatpush1.bf16.xpose.msra.mxu0 0
        %1123 = vmatprep.subr.bf16.mxu0 0
        %1124 = vmatpush1.bf16.xpose.msra.mxu0 0
        %1125 = vmatprep.subr.bf16.mxu0 0
        %1126 = vmatpush1.bf16.xpose.msra.mxu0 0
        %1127 = vmatprep.subr.bf16.mxu0 0
        %1128 = vmatpush1.bf16.xpose.msra.mxu0 0
        %1129 = vmatprep.subr.bf16.mxu0 0
        %1130 = vmatpush1.bf16.xpose.msra.mxu0 0
        %1131 = vmatprep.subr.bf16.mxu0 0
        %1132 = vmatpush1.bf16.xpose.msra.mxu0 0
        %1133 = vmatprep.mubr.bf16.mxu0 0
        %1134 = vmatmul.mubr.bf16.gmra.mrb[0].mxu0 %v1082
        %v1135 = vpop.f32.mrb[0].mxu0
        %v1136 = vadd.f32 0.0, %v1135
        %v1137 = vpop.f32.mrb[0].mxu0
        %v1138 = vpop.f32.mrb[0].mxu0
        %v1139 = vpop.f32.mrb[0].mxu0
        %1140 = vdwg.mxu0
        %v1141 = vmul.f32 %v1136, 0.17677669
        %v1143 = vlaneseq
        %v1144 = vshrl.u32 %v1143, 7
        %v1145 = vsub.s32 0, %v1144
        %v1146 = vrot.slane %v1100, %v1145
        %v1148 = vadd.f32 %v1141, %v1146
        %1149 = vmax.xlane.f32.xlu0 %v1148
        %v1150 = vpop.xlane.xlu0 %1149
        %v1151 = vsub.f32 %v1148, %v1150
        %v1152 = vmul.f32 %v1151, 1.442695
        %v1153 = vpow.pop %v1152
        %1154 = vadd.xlane.f32.xlu0 %v1153
        %v1155 = vpop.xlane.xlu0 %1154
        %v1156 = vrcp.pop %v1155
        %v1157 = vmul.f32 %v1153, %v1156
        %v1158 = vpack.c.bf16 %v1157, %v1157
        %1159 = vmatprep.subr.bf16.mxu0 0
        %1160 = vmatpush1.bf16.msra.mxu0 %v1091
        %1161 = vmatprep.subr.bf16.mxu0 0
        %1162 = vmatpush1.bf16.msra.mxu0 %v1092
        %1163 = vmatprep.subr.bf16.mxu0 0
        %1164 = vmatpush1.bf16.msra.mxu0 %v1093
        %1165 = vmatprep.subr.bf16.mxu0 0
        %1166 = vmatpush1.bf16.msra.mxu0 %v1094
        %1167 = vmatprep.subr.bf16.mxu0 0
        %1168 = vmatpush1.bf16.msra.mxu0 %v1095
        %1169 = vmatprep.subr.bf16.mxu0 0
        %1170 = vmatpush1.bf16.msra.mxu0 %v1096
        %1171 = vmatprep.subr.bf16.mxu0 0
        %1172 = vmatpush1.bf16.msra.mxu0 %v1097
        %1173 = vmatprep.subr.bf16.mxu0 0
        %1174 = vmatpush1.bf16.msra.mxu0 %v1098
        %1175 = vmatprep.subr.bf16.mxu0 0
        %1176 = vmatpush1.bf16.msra.mxu0 0
        %1177 = vmatprep.subr.bf16.mxu0 0
        %1178 = vmatpush1.bf16.msra.mxu0 0
        %1179 = vmatprep.subr.bf16.mxu0 0
        %1180 = vmatpush1.bf16.msra.mxu0 0
        %1181 = vmatprep.subr.bf16.mxu0 0
        %1182 = vmatpush1.bf16.msra.mxu0 0
        %1183 = vmatprep.subr.bf16.mxu0 0
        %1184 = vmatpush1.bf16.msra.mxu0 0
        %1185 = vmatprep.subr.bf16.mxu0 0
        %1186 = vmatpush1.bf16.msra.mxu0 0
        %1187 = vmatprep.subr.bf16.mxu0 0
        %1188 = vmatpush1.bf16.msra.mxu0 0
        %1189 = vmatprep.subr.bf16.mxu0 0
        %1190 = vmatpush1.bf16.msra.mxu0 0
        %1191 = vmatprep.mubr.bf16.mxu0 0
        %1192 = vmatmul.mubr.bf16.gmra.mrb[0].mxu0 %v1158
        %v1193 = vpop.f32.mrb[0].mxu0
        %v1194 = vadd.f32 0.0, %v1193
        %v1195 = vpop.f32.mrb[0].mxu0
        %v1196 = vpop.f32.mrb[0].mxu0
        %v1197 = vpop.f32.mrb[0].mxu0
        %1198 = vdwg.mxu0
        %v1199 = vpack.c.bf16 %v1194, %v1194
        %v1200 = vld [vmem:[#allocation11] sm:$0xf]
        %v1201 = vld [vmem:[#allocation11 + $0x4] sm:$0xf]
        %v1202 = vld [vmem:[#allocation11 + $0x8] sm:$0xf]
        %v1203 = vld [vmem:[#allocation11 + $0xc] sm:$0xf]
        %v1204 = vld [vmem:[#allocation11 + $0x10] sm:$0xf]
        %v1205 = vld [vmem:[#allocation11 + $0x14] sm:$0xf]
        %v1206 = vld [vmem:[#allocation11 + $0x18] sm:$0xf]
        %v1207 = vld [vmem:[#allocation11 + $0x1c] sm:$0xf]
        %v1208 = vld [vmem:[#allocation11 + $0x20] sm:$0xf]
        %v1209 = vld [vmem:[#allocation11 + $0x24] sm:$0xf]
        %v1210 = vld [vmem:[#allocation11 + $0x28] sm:$0xf]
        %v1211 = vld [vmem:[#allocation11 + $0x2c] sm:$0xf]
        %v1212 = vld [vmem:[#allocation11 + $0x30] sm:$0xf]
        %v1213 = vld [vmem:[#allocation11 + $0x34] sm:$0xf]
        %v1214 = vld [vmem:[#allocation11 + $0x38] sm:$0xf]
        %v1215 = vld [vmem:[#allocation11 + $0x3c] sm:$0xf]
        %v1216 = vld [vmem:[%s10] sm:$0x1]
        %v1218 = vlaneseq
        %v1219 = vshrl.u32 %v1218, 7
        %v1220 = vsub.s32 0, %v1219
        %v1221 = vrot.slane %v1216, %v1220
        %v1239 = vunpack.c.l.b16 %v1200
        %v1240 = vunpack.c.l.b16 %v1201
        %v1241 = vunpack.c.l.b16 %v1202
        %v1242 = vunpack.c.l.b16 %v1203
        %v1243 = vunpack.c.l.b16 %v1204
        %v1244 = vunpack.c.l.b16 %v1205
        %v1245 = vunpack.c.l.b16 %v1206
        %v1246 = vunpack.c.l.b16 %v1207
        %v1247 = vunpack.c.l.b16 %v1208
        %v1248 = vunpack.c.l.b16 %v1209
        %v1249 = vunpack.c.l.b16 %v1210
        %v1250 = vunpack.c.l.b16 %v1211
        %v1251 = vunpack.c.l.b16 %v1212
        %v1252 = vunpack.c.l.b16 %v1213
        %v1253 = vunpack.c.l.b16 %v1214
        %v1254 = vunpack.c.l.b16 %v1215
        %v1255 = vpack.c.b16 %v1240, %v1239
        %v1256 = vpack.c.b16 %v1242, %v1241
        %v1257 = vpack.c.b16 %v1244, %v1243
        %v1258 = vpack.c.b16 %v1246, %v1245
        %v1259 = vpack.c.b16 %v1248, %v1247
        %v1260 = vpack.c.b16 %v1250, %v1249
        %v1261 = vpack.c.b16 %v1252, %v1251
        %v1262 = vpack.c.b16 %v1254, %v1253
        %1271 = vmatprep.subr.bf16.mxu0 0
        %1272 = vmatpush1.bf16.msra.mxu0 %v1255
        %1273 = vmatprep.subr.bf16.mxu0 0
        %1274 = vmatpush1.bf16.msra.mxu0 %v1256
        %1275 = vmatprep.subr.bf16.mxu0 0
        %1276 = vmatpush1.bf16.msra.mxu0 %v1257
        %1277 = vmatprep.subr.bf16.mxu0 0
        %1278 = vmatpush1.bf16.msra.mxu0 %v1258
        %1279 = vmatprep.subr.bf16.mxu0 0
        %1280 = vmatpush1.bf16.msra.mxu0 %v1259
        %1281 = vmatprep.subr.bf16.mxu0 0
        %1282 = vmatpush1.bf16.msra.mxu0 %v1260
        %1283 = vmatprep.subr.bf16.mxu0 0
        %1284 = vmatpush1.bf16.msra.mxu0 %v1261
        %1285 = vmatprep.subr.bf16.mxu0 0
        %1286 = vmatpush1.bf16.msra.mxu0 %v1262
        %1287 = vmatprep.subr.bf16.mxu0 0
        %1288 = vmatpush1.bf16.msra.mxu0 0
        %1289 = vmatprep.subr.bf16.mxu0 0
        %1290 = vmatpush1.bf16.msra.mxu0 0
        %1291 = vmatprep.subr.bf16.mxu0 0
        %1292 = vmatpush1.bf16.msra.mxu0 0
        %1293 = vmatprep.subr.bf16.mxu0 0
        %1294 = vmatpush1.bf16.msra.mxu0 0
        %1295 = vmatprep.subr.bf16.mxu0 0
        %1296 = vmatpush1.bf16.msra.mxu0 0
        %1297 = vmatprep.subr.bf16.mxu0 0
        %1298 = vmatpush1.bf16.msra.mxu0 0
        %1299 = vmatprep.subr.bf16.mxu0 0
        %1300 = vmatpush1.bf16.msra.mxu0 0
        %1301 = vmatprep.subr.bf16.mxu0 0
        %1302 = vmatpush1.bf16.msra.mxu0 0
        %1303 = vmatprep.mubr.bf16.mxu0 0
        %1304 = vmatmul.mubr.bf16.gmra.mrb[0].mxu0 %v1199
        %v1305 = vpop.f32.mrb[0].mxu0
        %v1306 = vadd.f32 %v1221, %v1305
        %v1307 = vpop.f32.mrb[0].mxu0
        %v1308 = vpop.f32.mrb[0].mxu0
        %v1309 = vpop.f32.mrb[0].mxu0
        %1310 = vdwg.mxu0
        %v1311 = vadd.f32 %v1306, %v569
        %1312 = vadd.xlane.f32.xlu0 %v1311
        %v1313 = vpop.xlane.xlu0 %1312
        %v1314 = vmul.f32 %v1313, 0.03125
        %v1315 = vsub.f32 %v1311, %v1314
        %v1316 = vmul.f32 %v1315, %v1315
        %1317 = vadd.xlane.f32.xlu0 %v1316
        %v1318 = vpop.xlane.xlu0 %1317
        %v1319 = vmul.f32 %v1314, 96.0
        %v1320 = vmul.f32 %v1319, %v1314
        %v1321 = vsub.f32 %v1318, %v1320
        %v1322 = vmul.f32 %v1321, 0.03125
        %v1323 = vadd.f32 %v1322, 1e-05
        %v1324 = vrsqrt.pop %v1323
        %v1325 = vmul.f32 %v1315, %v1324
        %v1326 = vld [vmem:[%s11] sm:$0x1]
        %v1328 = vlaneseq
        %v1329 = vshrl.u32 %v1328, 7
        %v1330 = vsub.s32 0, %v1329
        %v1331 = vrot.slane %v1326, %v1330
        %v1333 = vmul.f32 %v1325, %v1331
        %v1334 = vld [vmem:[%s12] sm:$0x1]
        %v1336 = vlaneseq
        %v1337 = vshrl.u32 %v1336, 7
        %v1338 = vsub.s32 0, %v1337
        %v1339 = vrot.slane %v1334, %v1338
        %v1341 = vadd.f32 %v1333, %v1339
        %1342 = vst [vmem:[%s564] sm:$0xff] %v1341
        %s1343 = sand.u32 %s331, 1
        %s1344 = scalar_lea.sflag [#allocation4], %s1343
        %s1345 = sand.u32 %s331, 1
        %s1346 = smul.addr %s1345, 8
        %s1347 = scalar_lea.vmem [#allocation13], %s1346
        // Predicated region
        $region97: #{tpu_custom_call.1} parent=71 // pred_check
          %p1348 = pneg %p341
        $region98: #{tpu_custom_call.1} parent=71 // pred_check_branch
          %1350 = sbr.rel (%p1348) target = $region100
        $region99: #{tpu_custom_call.1} parent=71 // pred_region
          %s1352 = ssub.s32 128, 128
          %1353 = vsyncadd %s1344, %s1352
          %s1354 = smul.addr %s35, 128
          %s1355 = scalar_lea.hbm %s13, %s1354
          %s1357 = sshll.u32 %s1347, 4
          %s1358 = int_to_ptr.vmem [resolvable:$true] %s1357
          %1360 = dma.vmem_to_hbm [thread:$0]  %s1358, 128, %s1355, %s1344
        $region100: #{tpu_custom_call.1} parent=71 // pred_fallthru
          _
      $region72: #{tpu_custom_call.1} parent=5 // pred_fallthru
        _
      %p1361 = scmp.le.s32.totalorder 2, %s30
      // Predicated region
      $region101: #{tpu_custom_call.1} parent=5 // pred_check
        %p1362 = pneg %p1361
      $region102: #{tpu_custom_call.1} parent=5 // pred_check_branch
        %1364 = sbr.rel (%p1362) target = $region104
      $region103: #{tpu_custom_call.1} parent=5 // pred_region
        %s1365 = ssub.s32 %s30, 2
        // Predicated region
        $region105: #{tpu_custom_call.1} parent=103 // pred_check
          %p1366 = pneg %p347
        $region106: #{tpu_custom_call.1} parent=103 // pred_check_branch
          %1368 = sbr.rel (%p1366) target = $region108
        $region107: #{tpu_custom_call.1} parent=103 // pred_region
          %s1369 = sand.u32 %s332, 1
          %s1370 = scalar_lea.sflag [#allocation4], %s1369
          %s1371 = sand.u32 %s332, 1
          %s1372 = smul.addr %s1371, 8
          %s1373 = scalar_lea.vmem [#allocation13], %s1372
          %1374 = dma.done %s1370, 128
        $region108: #{tpu_custom_call.1} parent=103 // pred_fallthru
          _
      $region104: #{tpu_custom_call.1} parent=5 // pred_fallthru
        _
    $region6: #{tpu_custom_call.1} parent=1 // loop_footer
      %s34 = sadd.s32 1, %s30
    $region7: #{tpu_custom_call.1} parent=1 // loop_footer_branch
      %29 = sbr.rel target = $region3
    $region8: #{tpu_custom_call.1} parent=1 // loop_exit
      _
    %1375 = vsyncpa [#allocation3], 1
    %s1376 = scalar_lea.sflag [#allocation3], 1
    %1377 = vsyncpa %s1376, 1
    %1378 = vsyncpa [#allocation6], 1
    %s1379 = scalar_lea.sflag [#allocation6], 1
    %1380 = vsyncpa %s1379, 1
    %1381 = vsyncpa [#allocation9], 1
    %1382 = vsyncpa [#allocation12], 1
    %1383 = vsyncpa [#allocation4], 1
    %s1384 = scalar_lea.sflag [#allocation4], 1
    %1385 = vsyncpa %s1384, 1

</llo_original>
